<compile_context>
chip_gen: v7x
topology: tpu7x:2x2x1
jax: 0.10.0
libtpu: 0.0.40
codegen_flags: <defaults>
</compile_context>

<pallas_src>
import functools

import jax
import jax.numpy as jnp
from jax.experimental import pallas as pl
from jax.experimental.pallas import tpu as pltpu


C_PAD = 128  # lane-aligned channel width for weights / intermediates / output


# ----------------------------------------------------------------------------
# Pallas kernel: fused (1x1 conv + BN + ReLU) x2 + 1x1 conv, then aggregation
# (sum / max / avg) over the umbrella-triangle axis.
# ----------------------------------------------------------------------------
def _umbrella_mlp_kernel(x_ref, w0_ref, b0_ref, w1_ref, b1_ref, w2_ref, b2_ref,
                         o_ref, *, g, aggr_type):
    rows, _ = x_ref.shape                       # rows = TG * G (bf16 block)
    tg = rows // g
    # layer 0: Conv2d(bias=False) + folded BN + ReLU   (bf16 x bf16 -> f32)
    h = jnp.dot(x_ref[...], w0_ref[...],
                preferred_element_type=jnp.float32) + b0_ref[...]
    h = jnp.maximum(h, 0.0)
    # layer 1: Conv2d(bias=True) + folded BN + ReLU
    h = jnp.dot(h.astype(jnp.bfloat16), w1_ref[...],
                preferred_element_type=jnp.float32) + b1_ref[...]
    h = jnp.maximum(h, 0.0)

    if aggr_type == "max":
        # max does NOT commute with the affine layer 2 -> keep original order.
        h = jnp.dot(h.astype(jnp.bfloat16), w2_ref[...],
                    preferred_element_type=jnp.float32) + b2_ref[...]
        o_ref[...] = jnp.max(h.reshape(tg, g, C_PAD), axis=1).astype(o_ref.dtype)
    else:
        # sum / avg commute with the (affine, no-ReLU) layer 2: reduce over G
        # first, shrinking layer-2's M dimension by G.
        if aggr_type == "avg":
            red = jnp.mean(h.reshape(tg, g, C_PAD), axis=1)
            bias2 = b2_ref[...]
        else:                                    # 'sum' (module default)
            red = jnp.sum(h.reshape(tg, g, C_PAD), axis=1)
            bias2 = float(g) * b2_ref[...]       # sum of G identical bias copies
        out = jnp.dot(red.astype(jnp.bfloat16), w2_ref[...],
                      preferred_element_type=jnp.float32) + bias2
        o_ref[...] = out.astype(o_ref.dtype)


def _round_up(x, m):
    return ((x + m - 1) // m) * m


def _choose_block_rows(m):
    # Target ~512 points per step (TG*G = 4096 matmul rows for layers 0/1),
    # amortizing the ~0.35 us grid-step overhead against the bf16 MXU time.
    # For small inputs shrink TG so the grid still has >= 2 steps (v7x has
    # 2 TensorCores sharing the "parallel" grid axis).  Multiple of 16 keeps
    # bf16 output blocks sublane-aligned.
    target = 512
    if m >= 2 * target:
        return target
    return max(16, _round_up((m + 1) // 2, 16))


def umbrella_mlp_aggregate(x, weights, biases, aggr_type="sum"):
    """x: (M, G, C_in) f32.  weights bf16: [(C_in,128),(128,128),(128,128)];
    biases f32: [(1,128)]*3.  Returns (M, C_PAD) bf16; only [:, :C_out] is
    meaningful."""
    m, g, c_in = x.shape
    tg = _choose_block_rows(m)
    m_pad = _round_up(m, tg)
    if m_pad != m:
        # Padded rows only create extra *output rows* that are sliced off
        # below; the aggregation is per point, so padding never leaks into
        # real outputs and needs no masking.
        x = jnp.pad(x, ((0, m_pad - m), (0, 0), (0, 0)))
    # Pre-flatten to (M*G, C_in) and cast to bf16: single contiguous slab per
    # step, channel-compact in HBM, bf16 MXU operand.
    x2 = x.reshape(m_pad * g, c_in).astype(jnp.bfloat16)
    w0, w1, w2 = weights
    b0, b1, b2 = biases

    rows01 = m_pad * g
    rows2 = rows01 if aggr_type == "max" else m_pad
    flops = (2 * rows01 * c_in * C_PAD
             + 2 * rows01 * C_PAD * C_PAD
             + 2 * rows2 * C_PAD * C_PAD)
    bytes_accessed = (2 * rows01 * c_in                       # bf16 activations
                      + 2 * m_pad * C_PAD                     # bf16 output
                      + 2 * (w0.size + w1.size + w2.size)     # bf16 weights
                      + 4 * (b0.size + b1.size + b2.size))    # f32 biases

    out = pl.pallas_call(
        functools.partial(_umbrella_mlp_kernel, g=g, aggr_type=aggr_type),
        out_shape=jax.ShapeDtypeStruct((m_pad, C_PAD), jnp.bfloat16),
        grid=(m_pad // tg,),
        in_specs=[
            # activation stream: 2-D, channel-compact (lane padding to 128
            # only happens inside VMEM/vregs, where it is free).
            pl.BlockSpec((tg * g, c_in), lambda i: (i, 0)),
            # weights/biases: constant index_map => resident, DMA'd once.
            pl.BlockSpec((c_in, C_PAD), lambda i: (0, 0)),
            pl.BlockSpec((1, C_PAD), lambda i: (0, 0)),
            pl.BlockSpec((C_PAD, C_PAD), lambda i: (0, 0)),
            pl.BlockSpec((1, C_PAD), lambda i: (0, 0)),
            pl.BlockSpec((C_PAD, C_PAD), lambda i: (0, 0)),
            pl.BlockSpec((1, C_PAD), lambda i: (0, 0)),
        ],
        out_specs=pl.BlockSpec((tg, C_PAD), lambda i: (i, 0)),
        compiler_params=pltpu.CompilerParams(
            dimension_semantics=("parallel",),
            vmem_limit_bytes=32 * 1024 * 1024,
        ),
        cost_estimate=pl.CostEstimate(
            flops=int(flops), transcendentals=0,
            bytes_accessed=int(bytes_accessed)),
    )(x2, w0, b0, w1, b1, w2, b2)
    return out[:m]


# ----------------------------------------------------------------------------
# Plain-JAX glue: kNN grouping, umbrella construction, normals, polar coords.
# (Data-dependent sort/gather ops — kept as XLA ops outside the kernel.)
# ----------------------------------------------------------------------------
def square_distance(src, dst):
    return jnp.sum((src[:, :, None, :] - dst[:, None, :, :]) ** 2, axis=-1)


def query_knn_point(k, xyz, new_xyz):
    # TODO(synk): query_knn_point was not supplied with the module; this is the
    # standard RepSurf kNN (sorted top-k of squared distances).
    dist = square_distance(new_xyz, xyz)
    _, idx = jax.lax.top_k(-dist, k)
    return idx


def index_points(points, idx):
    # TODO(synk): index_points was not supplied; standard RepSurf gather.
    b = jnp.arange(points.shape[0])[:, None, None]
    return points[b, idx]                                    # (B, N, K, C)


def xyz2sphere(xyz, normalize=True):
    # TODO(synk): xyz2sphere was not supplied; standard RepSurf implementation.
    rho = jnp.sqrt(jnp.sum(xyz ** 2, axis=-1, keepdims=True))
    safe_rho = jnp.where(rho == 0, 1.0, rho)
    theta = jnp.arccos(jnp.clip(xyz[..., 2:3] / safe_rho, -1.0, 1.0))
    theta = jnp.where(rho == 0, 0.0, theta)
    phi = jnp.arctan2(xyz[..., 1:2], xyz[..., 0:1])
    if normalize:
        theta = theta / jnp.pi
        phi = phi / (2.0 * jnp.pi) + 0.5
    return jnp.concatenate([rho, theta, phi], axis=-1)


def resort_points(points, idx):
    # points: (B, N, G, 3); idx: (B, N, G)
    b = jnp.arange(points.shape[0])[:, None, None]
    n = jnp.arange(points.shape[1])[None, :, None]
    return points[b, n, idx]


def group_by_umbrella(xyz, new_xyz, k=9):
    idx = query_knn_point(k, xyz, new_xyz)                   # (B, N, k)
    group_xyz = index_points(xyz, idx)[:, :, 1:]             # (B, N, k-1, 3)
    group_xyz_norm = group_xyz - new_xyz[:, :, None, :]
    group_phi = xyz2sphere(group_xyz_norm)[..., 2]           # (B, N, k-1)
    sort_idx = jnp.argsort(group_phi, axis=-1)
    sorted_group_xyz = resort_points(group_xyz_norm, sort_idx)[:, :, :, None, :]
    sorted_group_xyz_roll = jnp.roll(sorted_group_xyz, -1, axis=-3)
    group_centroid = jnp.zeros_like(sorted_group_xyz)
    return jnp.concatenate(
        [group_centroid, sorted_group_xyz, sorted_group_xyz_roll], axis=-2)


def cal_normal(group_xyz, key, random_inv=False, is_group=False):
    # TODO(synk): cal_normal was not supplied; standard RepSurf implementation
    # (torch.randint batch flip replaced by a jax PRNG key).
    edge_vec1 = group_xyz[..., 1, :] - group_xyz[..., 0, :]
    edge_vec2 = group_xyz[..., 2, :] - group_xyz[..., 0, :]
    nor = jnp.cross(edge_vec1, edge_vec2)
    unit_nor = nor / jnp.linalg.norm(nor, axis=-1, keepdims=True)  # NaN if degenerate (as in torch)
    if not is_group:
        pos_mask = (unit_nor[..., 0] > 0).astype(jnp.float32) * 2.0 - 1.0
    else:
        pos_mask = (unit_nor[..., 0:1, 0] > 0).astype(jnp.float32) * 2.0 - 1.0
    unit_nor = unit_nor * pos_mask[..., None]
    if random_inv:
        random_mask = (jax.random.randint(key, (group_xyz.shape[0], 1, 1), 0, 2)
                       .astype(jnp.float32) * 2.0 - 1.0)
        unit_nor = unit_nor * (random_mask if not is_group else random_mask[..., None])
    return unit_nor


def cal_center(group_xyz):
    # TODO(synk): cal_center was not supplied; standard RepSurf implementation.
    return jnp.mean(group_xyz, axis=-2)


def cal_const(normal, center, is_normal=True):
    # TODO(synk): cal_const was not supplied; standard RepSurf implementation.
    const = jnp.sum(normal * center, axis=-1, keepdims=True)
    return const / jnp.sqrt(3.0) if is_normal else const


def check_nan_umb(normal, center, pos=None):
    # TODO(synk): check_nan_umb was not supplied; standard RepSurf implementation.
    mask = jnp.sum(jnp.isnan(normal), axis=-1) > 0                 # (B, N, G)
    mask_first = jnp.argmax((~mask).astype(jnp.int32), axis=-1)    # (B, N)
    b = jnp.arange(normal.shape[0])[:, None]
    n = jnp.arange(normal.shape[1])[None, :]

    def fix(x):
        first = x[b, n, mask_first][:, :, None, :]                 # (B, N, 1, C)
        return jnp.where(mask[..., None], first, x)

    normal = fix(normal)
    center = fix(center)
    if pos is not None:
        return normal, center, fix(pos)
    return normal, center


# ----------------------------------------------------------------------------
# Module port
# ----------------------------------------------------------------------------
class UmbrellaSurfaceConstructorPallas:
    """JAX/Pallas port of UmbrellaSurfaceConstructor (BatchNorm folded, eval)."""

    def __init__(self, k, in_channel, aggr_type="sum", return_dist=False,
                 random_inv=True, key=None):
        self.k = k
        self.in_channel = in_channel
        self.aggr_type = aggr_type
        self.return_dist = return_dist
        self.random_inv = random_inv
        if key is None:
            key = jax.random.PRNGKey(0)
        key, self.rand_inv_key = jax.random.split(key)

        eps = 1e-5
        c = in_channel
        keys = jax.random.split(key, 12)

        def make_layer(kw, kb, kg, kbt, has_bias, has_bn):
            w = 0.1 * jax.random.normal(kw, (c, c), jnp.float32)         # (out, in)
            bias = (0.05 * jax.random.normal(kb, (c,), jnp.float32)
                    if has_bias else jnp.zeros((c,), jnp.float32))
            if has_bn:
                gamma = 1.0 + 0.1 * jax.random.normal(kg, (c,), jnp.float32)
                beta = 0.05 * jax.random.normal(kbt, (c,), jnp.float32)
                r_mean = jnp.zeros((c,), jnp.float32)
                r_var = jnp.ones((c,), jnp.float32)
                scale = gamma / jnp.sqrt(r_var + eps)
                w_eff = w * scale[:, None]
                b_eff = scale * (bias - r_mean) + beta
            else:
                w_eff, b_eff = w, bias
            return jnp.transpose(w_eff), b_eff.reshape(1, -1)             # (in, out), (1, out)

        w0, b0 = make_layer(keys[0], keys[1], keys[2], keys[3], False, True)
        w1, b1 = make_layer(keys[4], keys[5], keys[6], keys[7], True, True)
        w2, b2 = make_layer(keys[8], keys[9], keys[10], keys[11], True, False)

        # Lane-pad all output-channel dims (and inner dims of layers 1/2) to
        # 128 so every matmul N/K dim and the kernel output store are
        # lane-aligned.  Weights go bf16 (MXU operands); biases stay f32.
        def pad_cols(a):
            return jnp.pad(a, [(0, 0)] * (a.ndim - 1) + [(0, C_PAD - a.shape[-1])])

        def pad_rows(a):
            return jnp.pad(a, [(0, C_PAD - a.shape[0]), (0, 0)])

        self.w0 = pad_cols(w0).astype(jnp.bfloat16)               # (C_in, 128)
        self.w1 = pad_cols(pad_rows(w1)).astype(jnp.bfloat16)     # (128, 128)
        self.w2 = pad_cols(pad_rows(w2)).astype(jnp.bfloat16)     # (128, 128)
        self.b0 = pad_cols(b0)                                    # (1, 128) f32
        self.b1 = pad_cols(b1)
        self.b2 = pad_cols(b2)

    def __call__(self, center):
        # center: (B, 3, N) -- PyTorch channels-first layout.
        center = jnp.transpose(center, (0, 2, 1))                        # (B, N, 3)
        group_xyz = group_by_umbrella(center, center, k=self.k)          # (B,N,G,3,3)
        group_normal = cal_normal(group_xyz, self.rand_inv_key,
                                  random_inv=self.random_inv, is_group=True)
        group_center = cal_center(group_xyz)
        group_polar = xyz2sphere(group_center)
        if self.return_dist:
            group_pos = cal_const(group_normal, group_center)
            group_normal, group_center, group_pos = check_nan_umb(
                group_normal, group_center, group_pos)
            new_feature = jnp.concatenate(
                [group_center, group_polar, group_normal, group_pos], axis=-1)
        else:
            group_normal, group_center = check_nan_umb(group_normal, group_center)
            new_feature = jnp.concatenate(
                [group_center, group_polar, group_normal], axis=-1)

        B, N, G, C = new_feature.shape
        assert C == self.in_channel, (C, self.in_channel)
        x = new_feature.reshape(B * N, G, C).astype(jnp.float32)
        out = umbrella_mlp_aggregate(
            x, (self.w0, self.w1, self.w2), (self.b0, self.b1, self.b2),
            aggr_type=self.aggr_type)                                    # (B*N, 128) bf16
        out = out[:, :C].astype(jnp.float32).reshape(B, N, C)
        return jnp.transpose(out, (0, 2, 1))                             # (B, C, N)


# ----------------------------------------------------------------------------
# Demo / correctness check
# ----------------------------------------------------------------------------
if __name__ == "__main__":
    root = jax.random.PRNGKey(0)
    k_pts, k_params = jax.random.split(root)

    B, N, K = 2, 64, 9
    in_channel = 9                       # center(3) + polar(3) + normal(3)
    center = jax.random.normal(k_pts, (B, 3, N), jnp.float32)

    module = UmbrellaSurfaceConstructorPallas(
        k=K, in_channel=in_channel, aggr_type="sum", return_dist=False,
        random_inv=True, key=k_params)

    # Full module forward (jit), shape / NaN sanity.
    fwd = jax.jit(module.__call__)
    out = fwd(center)
    jax.block_until_ready(out)
    assert out.shape == (B, in_channel, N), out.shape
    assert not bool(jnp.any(jnp.isnan(out))), "NaN in module output"

    # Kernel-level correctness: compute the grouped features once (plain JAX),
    # run the Pallas kernel on them and compare against a pure-JAX reference
    # that mirrors the kernel math (bf16 matmul operands, f32 accumulation,
    # reduce-before-layer-2 for 'sum', bf16 output cast).
    c_t = jnp.transpose(center, (0, 2, 1))
    gxyz = group_by_umbrella(c_t, c_t, k=K)
    gnormal = cal_normal(gxyz, module.rand_inv_key, random_inv=True, is_group=True)
    gcenter = cal_center(gxyz)
    gpolar = xyz2sphere(gcenter)
    gnormal, gcenter = check_nan_umb(gnormal, gcenter)
    feat = jnp.concatenate([gcenter, gpolar, gnormal], axis=-1)          # (B,N,G,C)
    Cc = in_channel
    G = feat.shape[2]
    M = B * N

    got = umbrella_mlp_aggregate(
        feat.reshape(M, G, Cc).astype(jnp.float32),
        (module.w0, module.w1, module.w2),
        (module.b0, module.b1, module.b2),
        aggr_type="sum")
    got = got[:, :Cc].astype(jnp.float32)
    jax.block_until_ready(got)

    hx = feat.reshape(M * G, Cc).astype(jnp.bfloat16)
    h = jnp.maximum(jnp.dot(hx, module.w0,
                            preferred_element_type=jnp.float32) + module.b0, 0.0)
    h = jnp.maximum(jnp.dot(h.astype(jnp.bfloat16), module.w1,
                            preferred_element_type=jnp.float32) + module.b1, 0.0)
    red = h.reshape(M, G, C_PAD).sum(axis=1)
    ref_full = jnp.dot(red.astype(jnp.bfloat16), module.w2,
                       preferred_element_type=jnp.float32) + float(G) * module.b2
    ref = ref_full.astype(jnp.bfloat16).astype(jnp.float32)[:, :Cc]

    assert not bool(jnp.any(jnp.isnan(got))), "NaN in kernel output"
    assert jnp.allclose(got, ref, atol=2e-2, rtol=2e-2), \
        "Pallas kernel output does not match reference"

    print("KERNEL_OK")
</pallas_src>

<mosaic_0001>
module attributes {stable_mosaic.version = 11 : i64} {
  func.func @_umbrella_mlp_kernel(%arg0: i32, %arg1: memref<512x9xbf16, #tpu.memory_space<vmem>>, %arg2: memref<9x128xbf16, #tpu.memory_space<vmem>>, %arg3: memref<1x128xf32, #tpu.memory_space<vmem>>, %arg4: memref<128x128xbf16, #tpu.memory_space<vmem>>, %arg5: memref<1x128xf32, #tpu.memory_space<vmem>>, %arg6: memref<128x128xbf16, #tpu.memory_space<vmem>>, %arg7: memref<1x128xf32, #tpu.memory_space<vmem>>, %arg8: memref<64x128xbf16, #tpu.memory_space<vmem>>) attributes {dimension_semantics = [#tpu.dimension_semantics<parallel>], iteration_bounds = array<i64: 2>, scalar_prefetch = 0 : i64, scratch_operands = 0 : i64, tpu.core_type = #tpu.core_type<tc>, window_params = [{transform_indices = @transform_0, window_bounds = array<i64: 512, 9>}, {pipeline_mode = #tpu.pipeline_mode<synchronous>, transform_indices = @transform_1, window_bounds = array<i64: 9, 128>}, {pipeline_mode = #tpu.pipeline_mode<synchronous>, transform_indices = @transform_2, window_bounds = array<i64: 1, 128>}, {pipeline_mode = #tpu.pipeline_mode<synchronous>, transform_indices = @transform_3, window_bounds = array<i64: 128, 128>}, {pipeline_mode = #tpu.pipeline_mode<synchronous>, transform_indices = @transform_4, window_bounds = array<i64: 1, 128>}, {pipeline_mode = #tpu.pipeline_mode<synchronous>, transform_indices = @transform_5, window_bounds = array<i64: 128, 128>}, {pipeline_mode = #tpu.pipeline_mode<synchronous>, transform_indices = @transform_6, window_bounds = array<i64: 1, 128>}, {transform_indices = @transform_7, window_bounds = array<i64: 64, 128>}]} {
    %c0 = arith.constant 0 : index
    %c0_0 = arith.constant 0 : index
    %0 = vector.load %arg1[%c0, %c0_0] : memref<512x9xbf16, #tpu.memory_space<vmem>>, vector<512x9xbf16>
    %c0_1 = arith.constant 0 : index
    %c0_2 = arith.constant 0 : index
    %1 = vector.load %arg2[%c0_1, %c0_2] : memref<9x128xbf16, #tpu.memory_space<vmem>>, vector<9x128xbf16>
    %cst = arith.constant dense<0.000000e+00> : vector<512x128xf32>
    %2 = tpu.matmul %0, %1, %cst {dimension_numbers = #tpu.dot_dimension_numbers<[1], [0], [0], [1], [0, 0, 1, 1], [], []>} : vector<512x9xbf16>, vector<9x128xbf16>, vector<512x128xf32> -> vector<512x128xf32>
    %c0_3 = arith.constant 0 : index
    %c0_4 = arith.constant 0 : index
    %3 = vector.load %arg3[%c0_3, %c0_4] : memref<1x128xf32, #tpu.memory_space<vmem>>, vector<1x128xf32>
    %4 = vector.broadcast %3 : vector<1x128xf32> to vector<512x128xf32>
    %5 = arith.addf %2, %4 : vector<512x128xf32>
    %cst_5 = arith.constant 0.000000e+00 : f32
    %6 = vector.broadcast %cst_5 : f32 to vector<512x128xf32>
    %7 = arith.maximumf %5, %6 : vector<512x128xf32>
    %8 = arith.truncf %7 : vector<512x128xf32> to vector<512x128xbf16>
    %c0_6 = arith.constant 0 : index
    %c0_7 = arith.constant 0 : index
    %9 = vector.load %arg4[%c0_6, %c0_7] : memref<128x128xbf16, #tpu.memory_space<vmem>>, vector<128x128xbf16>
    %cst_8 = arith.constant dense<0.000000e+00> : vector<512x128xf32>
    %10 = tpu.matmul %8, %9, %cst_8 {dimension_numbers = #tpu.dot_dimension_numbers<[1], [0], [0], [1], [0, 0, 1, 1], [], []>} : vector<512x128xbf16>, vector<128x128xbf16>, vector<512x128xf32> -> vector<512x128xf32>
    %c0_9 = arith.constant 0 : index
    %c0_10 = arith.constant 0 : index
    %11 = vector.load %arg5[%c0_9, %c0_10] : memref<1x128xf32, #tpu.memory_space<vmem>>, vector<1x128xf32>
    %12 = vector.broadcast %11 : vector<1x128xf32> to vector<512x128xf32>
    %13 = arith.addf %10, %12 : vector<512x128xf32>
    %cst_11 = arith.constant 0.000000e+00 : f32
    %14 = vector.broadcast %cst_11 : f32 to vector<512x128xf32>
    %15 = arith.maximumf %13, %14 : vector<512x128xf32>
    %16 = vector.shape_cast %15 : vector<512x128xf32> to vector<64x8x128xf32>
    %cst_12 = arith.constant dense<0.000000e+00> : vector<64x128xf32>
    %17 = vector.multi_reduction <add>, %16, %cst_12 [1] : vector<64x8x128xf32> to vector<64x128xf32>
    %c0_13 = arith.constant 0 : index
    %c0_14 = arith.constant 0 : index
    %18 = vector.load %arg7[%c0_13, %c0_14] : memref<1x128xf32, #tpu.memory_space<vmem>>, vector<1x128xf32>
    %cst_15 = arith.constant 8.000000e+00 : f32
    %19 = vector.broadcast %cst_15 : f32 to vector<1x128xf32>
    %20 = arith.mulf %19, %18 : vector<1x128xf32>
    %21 = arith.truncf %17 : vector<64x128xf32> to vector<64x128xbf16>
    %c0_16 = arith.constant 0 : index
    %c0_17 = arith.constant 0 : index
    %22 = vector.load %arg6[%c0_16, %c0_17] : memref<128x128xbf16, #tpu.memory_space<vmem>>, vector<128x128xbf16>
    %cst_18 = arith.constant dense<0.000000e+00> : vector<64x128xf32>
    %23 = tpu.matmul %21, %22, %cst_18 {dimension_numbers = #tpu.dot_dimension_numbers<[1], [0], [0], [1], [0, 0, 1, 1], [], []>} : vector<64x128xbf16>, vector<128x128xbf16>, vector<64x128xf32> -> vector<64x128xf32>
    %24 = vector.broadcast %20 : vector<1x128xf32> to vector<64x128xf32>
    %25 = arith.addf %23, %24 : vector<64x128xf32>
    %26 = arith.truncf %25 : vector<64x128xf32> to vector<64x128xbf16>
    %c0_19 = arith.constant 0 : index
    %c0_20 = arith.constant 0 : index
    %27 = vector.load %arg8[%c0_19, %c0_20] : memref<64x128xbf16, #tpu.memory_space<vmem>>, vector<64x128xbf16>
    tpu.vector_store %arg8[%c0_19, %c0_20], %26 {strides = array<i32>} : memref<64x128xbf16, #tpu.memory_space<vmem>>, vector<64x128xbf16>,
    return
  }
  func.func @transform_0(%arg0: i32) -> (i32, i32) {
    %c0_i32 = arith.constant 0 : i32
    %c0_i32_0 = arith.constant 0 : i32
    return %arg0, %c0_i32 : i32, i32
  }
  func.func @transform_1(%arg0: i32) -> (i32, i32) {
    %c0_i32 = arith.constant 0 : i32
    %c0_i32_0 = arith.constant 0 : i32
    %c0_i32_1 = arith.constant 0 : i32
    return %c0_i32, %c0_i32_0 : i32, i32
  }
  func.func @transform_2(%arg0: i32) -> (i32, i32) {
    %c0_i32 = arith.constant 0 : i32
    %c0_i32_0 = arith.constant 0 : i32
    %c0_i32_1 = arith.constant 0 : i32
    return %c0_i32, %c0_i32_0 : i32, i32
  }
  func.func @transform_3(%arg0: i32) -> (i32, i32) {
    %c0_i32 = arith.constant 0 : i32
    %c0_i32_0 = arith.constant 0 : i32
    %c0_i32_1 = arith.constant 0 : i32
    return %c0_i32, %c0_i32_0 : i32, i32
  }
  func.func @transform_4(%arg0: i32) -> (i32, i32) {
    %c0_i32 = arith.constant 0 : i32
    %c0_i32_0 = arith.constant 0 : i32
    %c0_i32_1 = arith.constant 0 : i32
    return %c0_i32, %c0_i32_0 : i32, i32
  }
  func.func @transform_5(%arg0: i32) -> (i32, i32) {
    %c0_i32 = arith.constant 0 : i32
    %c0_i32_0 = arith.constant 0 : i32
    %c0_i32_1 = arith.constant 0 : i32
    return %c0_i32, %c0_i32_0 : i32, i32
  }
  func.func @transform_6(%arg0: i32) -> (i32, i32) {
    %c0_i32 = arith.constant 0 : i32
    %c0_i32_0 = arith.constant 0 : i32
    %c0_i32_1 = arith.constant 0 : i32
    return %c0_i32, %c0_i32_0 : i32, i32
  }
  func.func @transform_7(%arg0: i32) -> (i32, i32) {
    %c0_i32 = arith.constant 0 : i32
    %c0_i32_0 = arith.constant 0 : i32
    return %arg0, %c0_i32 : i32, i32
  }
}

</mosaic_0001>

<llo_original>
// kernel: neg.1
$region0: #{neg.1}
  #allocation0 [shape = 's32[1]{0}', space=sflag, size = 0x4, scoped, tag = 'scoped memory for neg.1']
  %s0 = inlined_call_operand.vmem [shape: f32[2,64,64], index: 0, kind: input, shape index: {}]
  %s1 = inlined_call_operand.vmem [shape: f32[2,64,64], index: 1, kind: output, shape index: {}]
  %v2 = vld [vmem:[%s0] sm:$0xff]
  %3 = xla_tuple %v2
  %4 = xla_tuple %3
  %v5 = vxor.u32 %v2, 2147483648
  %6 = xla_tuple %v5
  %7 = vst [vmem:[%s1] sm:$0xff] %v5
  %s8 = scalar_lea.vmem %s0, 64
  %v9 = vld [vmem:[%s8] sm:$0xff]
  %10 = xla_tuple %v9
  %11 = xla_tuple %10
  %v12 = vxor.u32 %v9, 2147483648
  %13 = xla_tuple %v12
  %s14 = scalar_lea.vmem %s1, 64
  %15 = vst [vmem:[%s14] sm:$0xff] %v12
  %s16 = scalar_lea.vmem %s0, 8
  %v17 = vld [vmem:[%s16] sm:$0xff]
  %18 = xla_tuple %v17
  %19 = xla_tuple %18
  %v20 = vxor.u32 %v17, 2147483648
  %21 = xla_tuple %v20
  %s22 = scalar_lea.vmem %s1, 8
  %23 = vst [vmem:[%s22] sm:$0xff] %v20
  %s24 = scalar_lea.vmem %s0, 72
  %v25 = vld [vmem:[%s24] sm:$0xff]
  %26 = xla_tuple %v25
  %27 = xla_tuple %26
  %v28 = vxor.u32 %v25, 2147483648
  %29 = xla_tuple %v28
  %s30 = scalar_lea.vmem %s1, 72
  %31 = vst [vmem:[%s30] sm:$0xff] %v28
  %s32 = scalar_lea.vmem %s0, 16
  %v33 = vld [vmem:[%s32] sm:$0xff]
  %34 = xla_tuple %v33
  %35 = xla_tuple %34
  %v36 = vxor.u32 %v33, 2147483648
  %37 = xla_tuple %v36
  %s38 = scalar_lea.vmem %s1, 16
  %39 = vst [vmem:[%s38] sm:$0xff] %v36
  %s40 = scalar_lea.vmem %s0, 80
  %v41 = vld [vmem:[%s40] sm:$0xff]
  %42 = xla_tuple %v41
  %43 = xla_tuple %42
  %v44 = vxor.u32 %v41, 2147483648
  %45 = xla_tuple %v44
  %s46 = scalar_lea.vmem %s1, 80
  %47 = vst [vmem:[%s46] sm:$0xff] %v44
  %s48 = scalar_lea.vmem %s0, 24
  %v49 = vld [vmem:[%s48] sm:$0xff]
  %50 = xla_tuple %v49
  %51 = xla_tuple %50
  %v52 = vxor.u32 %v49, 2147483648
  %53 = xla_tuple %v52
  %s54 = scalar_lea.vmem %s1, 24
  %55 = vst [vmem:[%s54] sm:$0xff] %v52
  %s56 = scalar_lea.vmem %s0, 88
  %v57 = vld [vmem:[%s56] sm:$0xff]
  %58 = xla_tuple %v57
  %59 = xla_tuple %58
  %v60 = vxor.u32 %v57, 2147483648
  %61 = xla_tuple %v60
  %s62 = scalar_lea.vmem %s1, 88
  %63 = vst [vmem:[%s62] sm:$0xff] %v60
  %s64 = scalar_lea.vmem %s0, 32
  %v65 = vld [vmem:[%s64] sm:$0xff]
  %66 = xla_tuple %v65
  %67 = xla_tuple %66
  %v68 = vxor.u32 %v65, 2147483648
  %69 = xla_tuple %v68
  %s70 = scalar_lea.vmem %s1, 32
  %71 = vst [vmem:[%s70] sm:$0xff] %v68
  %s72 = scalar_lea.vmem %s0, 96
  %v73 = vld [vmem:[%s72] sm:$0xff]
  %74 = xla_tuple %v73
  %75 = xla_tuple %74
  %v76 = vxor.u32 %v73, 2147483648
  %77 = xla_tuple %v76
  %s78 = scalar_lea.vmem %s1, 96
  %79 = vst [vmem:[%s78] sm:$0xff] %v76
  %s80 = scalar_lea.vmem %s0, 40
  %v81 = vld [vmem:[%s80] sm:$0xff]
  %82 = xla_tuple %v81
  %83 = xla_tuple %82
  %v84 = vxor.u32 %v81, 2147483648
  %85 = xla_tuple %v84
  %s86 = scalar_lea.vmem %s1, 40
  %87 = vst [vmem:[%s86] sm:$0xff] %v84
  %s88 = scalar_lea.vmem %s0, 104
  %v89 = vld [vmem:[%s88] sm:$0xff]
  %90 = xla_tuple %v89
  %91 = xla_tuple %90
  %v92 = vxor.u32 %v89, 2147483648
  %93 = xla_tuple %v92
  %s94 = scalar_lea.vmem %s1, 104
  %95 = vst [vmem:[%s94] sm:$0xff] %v92
  %s96 = scalar_lea.vmem %s0, 48
  %v97 = vld [vmem:[%s96] sm:$0xff]
  %98 = xla_tuple %v97
  %99 = xla_tuple %98
  %v100 = vxor.u32 %v97, 2147483648
  %101 = xla_tuple %v100
  %s102 = scalar_lea.vmem %s1, 48
  %103 = vst [vmem:[%s102] sm:$0xff] %v100
  %s104 = scalar_lea.vmem %s0, 112
  %v105 = vld [vmem:[%s104] sm:$0xff]
  %106 = xla_tuple %v105
  %107 = xla_tuple %106
  %v108 = vxor.u32 %v105, 2147483648
  %109 = xla_tuple %v108
  %s110 = scalar_lea.vmem %s1, 112
  %111 = vst [vmem:[%s110] sm:$0xff] %v108
  %s112 = scalar_lea.vmem %s0, 56
  %v113 = vld [vmem:[%s112] sm:$0xff]
  %114 = xla_tuple %v113
  %115 = xla_tuple %114
  %v116 = vxor.u32 %v113, 2147483648
  %117 = xla_tuple %v116
  %s118 = scalar_lea.vmem %s1, 56
  %119 = vst [vmem:[%s118] sm:$0xff] %v116
  %s120 = scalar_lea.vmem %s0, 120
  %v121 = vld [vmem:[%s120] sm:$0xff]
  %122 = xla_tuple %v121
  %123 = xla_tuple %122
  %v124 = vxor.u32 %v121, 2147483648
  %125 = xla_tuple %v124
  %s126 = scalar_lea.vmem %s1, 120
  %127 = vst [vmem:[%s126] sm:$0xff] %v124

// kernel: a_call__.1
$region0: #{a_call__.1}
  #allocation0 [shape = 'u32[]', space=smem, size = 0x4, offset = 0x4, fixed_abs, tag = 'smem constant byte address 0x4 - core index']
  #allocation1 [shape = 'u32[144,128]{1,0:T(1,128)}', space=vmem, size = 0x12000, scoped, tag = 'internal scratch']
  %s0 = inlined_call_operand.vmem [shape: bf16[1024,9], index: 0, kind: input, shape index: {}]
  %s1 = inlined_call_operand.vmem [shape: bf16[9,128], index: 1, kind: input, shape index: {}]
  %s2 = inlined_call_operand.vmem [shape: f32[1,128], index: 2, kind: input, shape index: {}]
  %s3 = inlined_call_operand.vmem [shape: bf16[128,128], index: 3, kind: input, shape index: {}]
  %s4 = inlined_call_operand.vmem [shape: f32[1,128], index: 4, kind: input, shape index: {}]
  %s5 = inlined_call_operand.vmem [shape: bf16[128,128], index: 5, kind: input, shape index: {}]
  %s6 = inlined_call_operand.vmem [shape: f32[1,128], index: 6, kind: input, shape index: {}]
  %s7 = inlined_call_operand.vmem [shape: bf16[128,128], index: 7, kind: output, shape index: {}]
  %s8 = sld [smem:[#allocation0]]
  $region61: #{a_call__.1} parent=0
    _
  %s10 = ssub.s32 1, %s8
  %s11 = scalar_select 0, %s10, %s8
  loop: start=0, step=1, limit=4
  $region2: #{a_call__.1} parent=0 // loop_pre_header
    _
  $region3: #{a_call__.1} parent=0 // loop_header
    %s13 = sphi 0, %s17
    %p14 = scmp.ge.s32.totalorder %s13, 4
    %s23 = sphi 0, %s25
    %s26 = sphi 0, %s23
    %s27 = sphi 0, %s26
    %s43 = sphi 0, %s27
    %s47 = sphi 0, %s47
    %s49 = sphi 0, %s47
    %s50 = sphi 0, %s49
    %s64 = sphi 0, %s50
    %s68 = sphi 0, %s68
    %s70 = sphi 0, %s68
    %s71 = sphi 0, %s70
    %s85 = sphi 0, %s71
    %s89 = sphi 0, %s89
    %s91 = sphi 0, %s89
    %s92 = sphi 0, %s91
    %s106 = sphi 0, %s92
    %s110 = sphi 0, %s110
    %s112 = sphi 0, %s110
    %s113 = sphi 0, %s112
    %s127 = sphi 0, %s113
    %s131 = sphi 0, %s131
    %s133 = sphi 0, %s131
    %s134 = sphi 0, %s133
    %s148 = sphi 0, %s134
    %s152 = sphi 0, %s152
    %s154 = sphi 0, %s152
    %s155 = sphi 0, %s154
    %s169 = sphi 0, %s155
    %s175 = sphi 0, %s177
    %s178 = sphi 0, %s175
    %s179 = sphi 0, %s178
    %s195 = sphi 0, %s179
  $region4: #{a_call__.1} parent=0 // loop_header_branch
    %16 = sbr.rel (%p14) target = $region8
  $region5: #{a_call__.1} parent=0 // loop_body
    %s18 = ssub.s32 %s13, 1
    %s19 = ssub.s32 %s13, 2
    %s20 = sadd.s32 %s13, 1
    %s21 = ssub.s32 %s13, %s20
    %p22 = scmp.eq.s32.totalorder %s21, 0
    %s24 = sadd.s32 %s23, 1
    %s25 = scalar_select %p22, %s23, %s24
    %p28 = pneg %p22
    %p29 = scmp.eq.s32.totalorder %s13, 1
    %p30 = por %p28, %p29
    %p31 = scmp.ne.s32.totalorder %s23, %s26
    %p32 = scmp.eq.s32.totalorder %s13, 0
    %p33 = por %p31, %p32
    %p34 = scmp.ne.s32.totalorder %s23, %s26
    %p35 = scmp.eq.s32.totalorder %s18, 1
    %p36 = por %p34, %p35
    %p37 = scmp.ne.s32.totalorder %s26, %s27
    %p38 = scmp.eq.s32.totalorder %s18, 0
    %p39 = por %p37, %p38
    %p40 = scmp.ne.s32.totalorder %s26, %s27
    %p41 = scmp.eq.s32.totalorder %s19, 1
    %p42 = por %p40, %p41
    %p44 = scmp.ne.s32.totalorder %s27, %s43
    %p45 = scmp.eq.s32.totalorder %s19, 0
    %p46 = por %p44, %p45
    %s48 = sadd.s32 %s47, 1
    %p51 = scmp.eq.s32.totalorder %s13, 1
    %p52 = scmp.ne.s32.totalorder %s47, %s49
    %p53 = scmp.eq.s32.totalorder %s13, 0
    %p54 = por %p52, %p53
    %p55 = scmp.ne.s32.totalorder %s47, %s49
    %p56 = scmp.eq.s32.totalorder %s18, 1
    %p57 = por %p55, %p56
    %p58 = scmp.ne.s32.totalorder %s49, %s50
    %p59 = scmp.eq.s32.totalorder %s18, 0
    %p60 = por %p58, %p59
    %p61 = scmp.ne.s32.totalorder %s49, %s50
    %p62 = scmp.eq.s32.totalorder %s19, 1
    %p63 = por %p61, %p62
    %p65 = scmp.ne.s32.totalorder %s50, %s64
    %p66 = scmp.eq.s32.totalorder %s19, 0
    %p67 = por %p65, %p66
    %s69 = sadd.s32 %s68, 1
    %p72 = scmp.eq.s32.totalorder %s13, 1
    %p73 = scmp.ne.s32.totalorder %s68, %s70
    %p74 = scmp.eq.s32.totalorder %s13, 0
    %p75 = por %p73, %p74
    %p76 = scmp.ne.s32.totalorder %s68, %s70
    %p77 = scmp.eq.s32.totalorder %s18, 1
    %p78 = por %p76, %p77
    %p79 = scmp.ne.s32.totalorder %s70, %s71
    %p80 = scmp.eq.s32.totalorder %s18, 0
    %p81 = por %p79, %p80
    %p82 = scmp.ne.s32.totalorder %s70, %s71
    %p83 = scmp.eq.s32.totalorder %s19, 1
    %p84 = por %p82, %p83
    %p86 = scmp.ne.s32.totalorder %s71, %s85
    %p87 = scmp.eq.s32.totalorder %s19, 0
    %p88 = por %p86, %p87
    %s90 = sadd.s32 %s89, 1
    %p93 = scmp.eq.s32.totalorder %s13, 1
    %p94 = scmp.ne.s32.totalorder %s89, %s91
    %p95 = scmp.eq.s32.totalorder %s13, 0
    %p96 = por %p94, %p95
    %p97 = scmp.ne.s32.totalorder %s89, %s91
    %p98 = scmp.eq.s32.totalorder %s18, 1
    %p99 = por %p97, %p98
    %p100 = scmp.ne.s32.totalorder %s91, %s92
    %p101 = scmp.eq.s32.totalorder %s18, 0
    %p102 = por %p100, %p101
    %p103 = scmp.ne.s32.totalorder %s91, %s92
    %p104 = scmp.eq.s32.totalorder %s19, 1
    %p105 = por %p103, %p104
    %p107 = scmp.ne.s32.totalorder %s92, %s106
    %p108 = scmp.eq.s32.totalorder %s19, 0
    %p109 = por %p107, %p108
    %s111 = sadd.s32 %s110, 1
    %p114 = scmp.eq.s32.totalorder %s13, 1
    %p115 = scmp.ne.s32.totalorder %s110, %s112
    %p116 = scmp.eq.s32.totalorder %s13, 0
    %p117 = por %p115, %p116
    %p118 = scmp.ne.s32.totalorder %s110, %s112
    %p119 = scmp.eq.s32.totalorder %s18, 1
    %p120 = por %p118, %p119
    %p121 = scmp.ne.s32.totalorder %s112, %s113
    %p122 = scmp.eq.s32.totalorder %s18, 0
    %p123 = por %p121, %p122
    %p124 = scmp.ne.s32.totalorder %s112, %s113
    %p125 = scmp.eq.s32.totalorder %s19, 1
    %p126 = por %p124, %p125
    %p128 = scmp.ne.s32.totalorder %s113, %s127
    %p129 = scmp.eq.s32.totalorder %s19, 0
    %p130 = por %p128, %p129
    %s132 = sadd.s32 %s131, 1
    %p135 = scmp.eq.s32.totalorder %s13, 1
    %p136 = scmp.ne.s32.totalorder %s131, %s133
    %p137 = scmp.eq.s32.totalorder %s13, 0
    %p138 = por %p136, %p137
    %p139 = scmp.ne.s32.totalorder %s131, %s133
    %p140 = scmp.eq.s32.totalorder %s18, 1
    %p141 = por %p139, %p140
    %p142 = scmp.ne.s32.totalorder %s133, %s134
    %p143 = scmp.eq.s32.totalorder %s18, 0
    %p144 = por %p142, %p143
    %p145 = scmp.ne.s32.totalorder %s133, %s134
    %p146 = scmp.eq.s32.totalorder %s19, 1
    %p147 = por %p145, %p146
    %p149 = scmp.ne.s32.totalorder %s134, %s148
    %p150 = scmp.eq.s32.totalorder %s19, 0
    %p151 = por %p149, %p150
    %s153 = sadd.s32 %s152, 1
    %p156 = scmp.eq.s32.totalorder %s13, 1
    %p157 = scmp.ne.s32.totalorder %s152, %s154
    %p158 = scmp.eq.s32.totalorder %s13, 0
    %p159 = por %p157, %p158
    %p160 = scmp.ne.s32.totalorder %s152, %s154
    %p161 = scmp.eq.s32.totalorder %s18, 1
    %p162 = por %p160, %p161
    %p163 = scmp.ne.s32.totalorder %s154, %s155
    %p164 = scmp.eq.s32.totalorder %s18, 0
    %p165 = por %p163, %p164
    %p166 = scmp.ne.s32.totalorder %s154, %s155
    %p167 = scmp.eq.s32.totalorder %s19, 1
    %p168 = por %p166, %p167
    %p170 = scmp.ne.s32.totalorder %s155, %s169
    %p171 = scmp.eq.s32.totalorder %s19, 0
    %p172 = por %p170, %p171
    %s173 = ssub.s32 %s13, %s20
    %p174 = scmp.eq.s32.totalorder %s173, 0
    %s176 = sadd.s32 %s175, 1
    %s177 = scalar_select %p174, %s175, %s176
    %p180 = pneg %p174
    %p181 = scmp.eq.s32.totalorder %s13, 1
    %p182 = por %p180, %p181
    %p183 = scmp.ne.s32.totalorder %s175, %s178
    %p184 = scmp.eq.s32.totalorder %s13, 0
    %p185 = por %p183, %p184
    %p186 = scmp.ne.s32.totalorder %s175, %s178
    %p187 = scmp.eq.s32.totalorder %s18, 1
    %p188 = por %p186, %p187
    %p189 = scmp.ne.s32.totalorder %s178, %s179
    %p190 = scmp.eq.s32.totalorder %s18, 0
    %p191 = por %p189, %p190
    %p192 = scmp.ne.s32.totalorder %s178, %s179
    %p193 = scmp.eq.s32.totalorder %s19, 1
    %p194 = por %p192, %p193
    %p196 = scmp.ne.s32.totalorder %s179, %s195
    %p197 = scmp.eq.s32.totalorder %s19, 0
    %p198 = por %p196, %p197
    %p199 = scmp.le.s32.totalorder 1, %s13
    %p200 = scmp.lt.s32.totalorder %s13, 3
    %p201 = pnand %p199, %p200
    %p202 = pneg %p201
    // Predicated region
    $region9: #{a_call__.1} parent=5 // pred_check
      _
    $region10: #{a_call__.1} parent=5 // pred_check_branch
      %204 = sbr.rel (%p201) target = $region12
    $region11: #{a_call__.1} parent=5 // pred_region
      %s205 = ssub.s32 %s13, 1
      // Predicated region
      $region13: #{a_call__.1} parent=11 // pred_check
        %p206 = pneg %p60
      $region14: #{a_call__.1} parent=11 // pred_check_branch
        %208 = sbr.rel (%p206) target = $region16
      $region15: #{a_call__.1} parent=11 // pred_region
        _
      $region16: #{a_call__.1} parent=11 // pred_fallthru
        _
      // Predicated region
      $region17: #{a_call__.1} parent=11 // pred_check
        %p209 = pneg %p81
      $region18: #{a_call__.1} parent=11 // pred_check_branch
        %211 = sbr.rel (%p209) target = $region20
      $region19: #{a_call__.1} parent=11 // pred_region
        _
      $region20: #{a_call__.1} parent=11 // pred_fallthru
        _
      // Predicated region
      $region21: #{a_call__.1} parent=11 // pred_check
        %p212 = pneg %p102
      $region22: #{a_call__.1} parent=11 // pred_check_branch
        %214 = sbr.rel (%p212) target = $region24
      $region23: #{a_call__.1} parent=11 // pred_region
        _
      $region24: #{a_call__.1} parent=11 // pred_fallthru
        _
      // Predicated region
      $region25: #{a_call__.1} parent=11 // pred_check
        %p215 = pneg %p123
      $region26: #{a_call__.1} parent=11 // pred_check_branch
        %217 = sbr.rel (%p215) target = $region28
      $region27: #{a_call__.1} parent=11 // pred_region
        _
      $region28: #{a_call__.1} parent=11 // pred_fallthru
        _
      // Predicated region
      $region29: #{a_call__.1} parent=11 // pred_check
        %p218 = pneg %p144
      $region30: #{a_call__.1} parent=11 // pred_check_branch
        %220 = sbr.rel (%p218) target = $region32
      $region31: #{a_call__.1} parent=11 // pred_region
        _
      $region32: #{a_call__.1} parent=11 // pred_fallthru
        _
      // Predicated region
      $region33: #{a_call__.1} parent=11 // pred_check
        %p221 = pneg %p165
      $region34: #{a_call__.1} parent=11 // pred_check_branch
        %223 = sbr.rel (%p221) target = $region36
      $region35: #{a_call__.1} parent=11 // pred_region
        _
      $region36: #{a_call__.1} parent=11 // pred_fallthru
        _
    $region12: #{a_call__.1} parent=5 // pred_fallthru
      _
    %p224 = scmp.lt.s32.totalorder %s13, 2
    // Predicated region
    $region37: #{a_call__.1} parent=5 // pred_check
      %p225 = pneg %p224
    $region38: #{a_call__.1} parent=5 // pred_check_branch
      %227 = sbr.rel (%p225) target = $region40
    $region39: #{a_call__.1} parent=5 // pred_region
      // Predicated region
      $region41: #{a_call__.1} parent=39 // pred_check
        %p228 = pneg %p33
      $region42: #{a_call__.1} parent=39 // pred_check_branch
        %230 = sbr.rel (%p228) target = $region44
      $region43: #{a_call__.1} parent=39 // pred_region
        %s231 = smul.u32 64, %s13
        %p232 = scmp.lt.s32.totalorder %s231, 127
        %s233 = scalar_select %p232, %s231, 127
        %s234 = smul.addr %s233, 4
        %s235 = scalar_lea.vmem %s0, %s234
        %s236 = smul.u32 64, %s13
      $region44: #{a_call__.1} parent=39 // pred_fallthru
        _
    $region40: #{a_call__.1} parent=5 // pred_fallthru
      _
    %p237 = scmp.le.s32.totalorder 1, %s13
    %p238 = scmp.lt.s32.totalorder %s13, 3
    %p239 = pnand %p237, %p238
    %p240 = pneg %p239
    // Predicated region
    $region45: #{a_call__.1} parent=5 // pred_check
      _
    $region46: #{a_call__.1} parent=5 // pred_check_branch
      %242 = sbr.rel (%p239) target = $region48
    $region47: #{a_call__.1} parent=5 // pred_region
      %s243 = ssub.s32 %s13, 1
      %s244 = smul.u32 64, %s18
      %p245 = scmp.lt.s32.totalorder %s244, 127
      %s246 = scalar_select %p245, %s244, 127
      %s247 = smul.addr %s246, 4
      %s248 = scalar_lea.vmem %s0, %s247
      %p249 = pneg %p39
      %p250 = pneg %p36
      %p251 = pneg %p60
      %p252 = pneg %p57
      %p253 = pneg %p81
      %p254 = pneg %p78
      %p255 = pneg %p102
      %p256 = pneg %p99
      %p257 = pneg %p123
      %p258 = pneg %p120
      %p259 = pneg %p144
      %p260 = pneg %p141
      %p261 = pneg %p165
      %p262 = pneg %p162
      %p263 = pneg %p191
      %p264 = pneg %p188
      %s265 = smul.u32 8, %s18
      %p266 = scmp.lt.s32.totalorder %s265, 15
      %s267 = scalar_select %p266, %s265, 15
      %s268 = smul.addr %s267, 4
      %s269 = scalar_lea.vmem %s7, %s268
      %s270 = smul.u32 64, %s18
      %p271 = scmp.lt.s32.totalorder %s270, 127
      %s272 = scalar_select %p271, %s270, 127
      %s273 = smul.addr %s272, 4
      %s274 = scalar_lea.vmem %s0, %s273
      %s275 = smul.u32 64, %s18
      %s276 = smul.u32 8, %s18
      %p277 = scmp.lt.s32.totalorder %s276, 15
      %s278 = scalar_select %p277, %s276, 15
      %s279 = smul.addr %s278, 4
      %s280 = scalar_lea.vmem %s7, %s279
      %s281 = smul.u32 8, %s18
      %v283 = vld [vmem:[%s274] sm:$0xf]
      %v284 = vld [vmem:[%s274 + $0x4] sm:$0xf]
      %v285 = vld [vmem:[%s274 + $0x8] sm:$0xf]
      %v286 = vld [vmem:[%s274 + $0xc] sm:$0xf]
      %v287 = vld [vmem:[%s274 + $0x10] sm:$0xf]
      %v288 = vld [vmem:[%s274 + $0x14] sm:$0xf]
      %v289 = vld [vmem:[%s274 + $0x18] sm:$0xf]
      %v290 = vld [vmem:[%s274 + $0x1c] sm:$0xf]
      %v291 = vld [vmem:[%s274 + $0x20] sm:$0xf]
      %v292 = vld [vmem:[%s274 + $0x24] sm:$0xf]
      %v293 = vld [vmem:[%s274 + $0x28] sm:$0xf]
      %v294 = vld [vmem:[%s274 + $0x2c] sm:$0xf]
      %v295 = vld [vmem:[%s274 + $0x30] sm:$0xf]
      %v296 = vld [vmem:[%s274 + $0x34] sm:$0xf]
      %v297 = vld [vmem:[%s274 + $0x38] sm:$0xf]
      %v298 = vld [vmem:[%s274 + $0x3c] sm:$0xf]
      %v299 = vld [vmem:[%s274 + $0x40] sm:$0xf]
      %v300 = vld [vmem:[%s274 + $0x44] sm:$0xf]
      %v301 = vld [vmem:[%s274 + $0x48] sm:$0xf]
      %v302 = vld [vmem:[%s274 + $0x4c] sm:$0xf]
      %v303 = vld [vmem:[%s274 + $0x50] sm:$0xf]
      %v304 = vld [vmem:[%s274 + $0x54] sm:$0xf]
      %v305 = vld [vmem:[%s274 + $0x58] sm:$0xf]
      %v306 = vld [vmem:[%s274 + $0x5c] sm:$0xf]
      %v307 = vld [vmem:[%s274 + $0x60] sm:$0xf]
      %v308 = vld [vmem:[%s274 + $0x64] sm:$0xf]
      %v309 = vld [vmem:[%s274 + $0x68] sm:$0xf]
      %v310 = vld [vmem:[%s274 + $0x6c] sm:$0xf]
      %v311 = vld [vmem:[%s274 + $0x70] sm:$0xf]
      %v312 = vld [vmem:[%s274 + $0x74] sm:$0xf]
      %v313 = vld [vmem:[%s274 + $0x78] sm:$0xf]
      %v314 = vld [vmem:[%s274 + $0x7c] sm:$0xf]
      %v315 = vld [vmem:[%s274 + $0x80] sm:$0xf]
      %v316 = vld [vmem:[%s274 + $0x84] sm:$0xf]
      %v317 = vld [vmem:[%s274 + $0x88] sm:$0xf]
      %v318 = vld [vmem:[%s274 + $0x8c] sm:$0xf]
      %v319 = vld [vmem:[%s274 + $0x90] sm:$0xf]
      %v320 = vld [vmem:[%s274 + $0x94] sm:$0xf]
      %v321 = vld [vmem:[%s274 + $0x98] sm:$0xf]
      %v322 = vld [vmem:[%s274 + $0x9c] sm:$0xf]
      %v323 = vld [vmem:[%s274 + $0xa0] sm:$0xf]
      %v324 = vld [vmem:[%s274 + $0xa4] sm:$0xf]
      %v325 = vld [vmem:[%s274 + $0xa8] sm:$0xf]
      %v326 = vld [vmem:[%s274 + $0xac] sm:$0xf]
      %v327 = vld [vmem:[%s274 + $0xb0] sm:$0xf]
      %v328 = vld [vmem:[%s274 + $0xb4] sm:$0xf]
      %v329 = vld [vmem:[%s274 + $0xb8] sm:$0xf]
      %v330 = vld [vmem:[%s274 + $0xbc] sm:$0xf]
      %v331 = vld [vmem:[%s274 + $0xc0] sm:$0xf]
      %v332 = vld [vmem:[%s274 + $0xc4] sm:$0xf]
      %v333 = vld [vmem:[%s274 + $0xc8] sm:$0xf]
      %v334 = vld [vmem:[%s274 + $0xcc] sm:$0xf]
      %v335 = vld [vmem:[%s274 + $0xd0] sm:$0xf]
      %v336 = vld [vmem:[%s274 + $0xd4] sm:$0xf]
      %v337 = vld [vmem:[%s274 + $0xd8] sm:$0xf]
      %v338 = vld [vmem:[%s274 + $0xdc] sm:$0xf]
      %v339 = vld [vmem:[%s274 + $0xe0] sm:$0xf]
      %v340 = vld [vmem:[%s274 + $0xe4] sm:$0xf]
      %v341 = vld [vmem:[%s274 + $0xe8] sm:$0xf]
      %v342 = vld [vmem:[%s274 + $0xec] sm:$0xf]
      %v343 = vld [vmem:[%s274 + $0xf0] sm:$0xf]
      %v344 = vld [vmem:[%s274 + $0xf4] sm:$0xf]
      %v345 = vld [vmem:[%s274 + $0xf8] sm:$0xf]
      %v346 = vld [vmem:[%s274 + $0xfc] sm:$0xf]
      %v347 = vld [vmem:[%s1] sm:$0xf]
      %v348 = vld [vmem:[%s1 + $0x4] sm:$0x1]
      %v349 = vld [vmem:[%s2] sm:$0x1]
      %v351 = vlaneseq
      %v352 = vshrl.u32 %v351, 7
      %v353 = vsub.s32 0, %v352
      %v354 = vrot.slane %v349, %v353
      %v420 = vunpack.c.l.b16 %v283
      %v421 = vunpack.c.l.b16 %v284
      %v422 = vunpack.c.l.b16 %v285
      %v423 = vunpack.c.l.b16 %v286
      %v424 = vunpack.c.l.b16 %v287
      %v425 = vunpack.c.l.b16 %v288
      %v426 = vunpack.c.l.b16 %v289
      %v427 = vunpack.c.l.b16 %v290
      %v428 = vunpack.c.l.b16 %v291
      %v429 = vunpack.c.l.b16 %v292
      %v430 = vunpack.c.l.b16 %v293
      %v431 = vunpack.c.l.b16 %v294
      %v432 = vunpack.c.l.b16 %v295
      %v433 = vunpack.c.l.b16 %v296
      %v434 = vunpack.c.l.b16 %v297
      %v435 = vunpack.c.l.b16 %v298
      %v436 = vunpack.c.l.b16 %v299
      %v437 = vunpack.c.l.b16 %v300
      %v438 = vunpack.c.l.b16 %v301
      %v439 = vunpack.c.l.b16 %v302
      %v440 = vunpack.c.l.b16 %v303
      %v441 = vunpack.c.l.b16 %v304
      %v442 = vunpack.c.l.b16 %v305
      %v443 = vunpack.c.l.b16 %v306
      %v444 = vunpack.c.l.b16 %v307
      %v445 = vunpack.c.l.b16 %v308
      %v446 = vunpack.c.l.b16 %v309
      %v447 = vunpack.c.l.b16 %v310
      %v448 = vunpack.c.l.b16 %v311
      %v449 = vunpack.c.l.b16 %v312
      %v450 = vunpack.c.l.b16 %v313
      %v451 = vunpack.c.l.b16 %v314
      %v452 = vunpack.c.l.b16 %v315
      %v453 = vunpack.c.l.b16 %v316
      %v454 = vunpack.c.l.b16 %v317
      %v455 = vunpack.c.l.b16 %v318
      %v456 = vunpack.c.l.b16 %v319
      %v457 = vunpack.c.l.b16 %v320
      %v458 = vunpack.c.l.b16 %v321
      %v459 = vunpack.c.l.b16 %v322
      %v460 = vunpack.c.l.b16 %v323
      %v461 = vunpack.c.l.b16 %v324
      %v462 = vunpack.c.l.b16 %v325
      %v463 = vunpack.c.l.b16 %v326
      %v464 = vunpack.c.l.b16 %v327
      %v465 = vunpack.c.l.b16 %v328
      %v466 = vunpack.c.l.b16 %v329
      %v467 = vunpack.c.l.b16 %v330
      %v468 = vunpack.c.l.b16 %v331
      %v469 = vunpack.c.l.b16 %v332
      %v470 = vunpack.c.l.b16 %v333
      %v471 = vunpack.c.l.b16 %v334
      %v472 = vunpack.c.l.b16 %v335
      %v473 = vunpack.c.l.b16 %v336
      %v474 = vunpack.c.l.b16 %v337
      %v475 = vunpack.c.l.b16 %v338
      %v476 = vunpack.c.l.b16 %v339
      %v477 = vunpack.c.l.b16 %v340
      %v478 = vunpack.c.l.b16 %v341
      %v479 = vunpack.c.l.b16 %v342
      %v480 = vunpack.c.l.b16 %v343
      %v481 = vunpack.c.l.b16 %v344
      %v482 = vunpack.c.l.b16 %v345
      %v483 = vunpack.c.l.b16 %v346
      %v484 = vpack.c.b16 %v421, %v420
      %v485 = vpack.c.b16 %v423, %v422
      %v486 = vpack.c.b16 %v425, %v424
      %v487 = vpack.c.b16 %v427, %v426
      %v488 = vpack.c.b16 %v429, %v428
      %v489 = vpack.c.b16 %v431, %v430
      %v490 = vpack.c.b16 %v433, %v432
      %v491 = vpack.c.b16 %v435, %v434
      %v492 = vpack.c.b16 %v437, %v436
      %v493 = vpack.c.b16 %v439, %v438
      %v494 = vpack.c.b16 %v441, %v440
      %v495 = vpack.c.b16 %v443, %v442
      %v496 = vpack.c.b16 %v445, %v444
      %v497 = vpack.c.b16 %v447, %v446
      %v498 = vpack.c.b16 %v449, %v448
      %v499 = vpack.c.b16 %v451, %v450
      %v500 = vpack.c.b16 %v453, %v452
      %v501 = vpack.c.b16 %v455, %v454
      %v502 = vpack.c.b16 %v457, %v456
      %v503 = vpack.c.b16 %v459, %v458
      %v504 = vpack.c.b16 %v461, %v460
      %v505 = vpack.c.b16 %v463, %v462
      %v506 = vpack.c.b16 %v465, %v464
      %v507 = vpack.c.b16 %v467, %v466
      %v508 = vpack.c.b16 %v469, %v468
      %v509 = vpack.c.b16 %v471, %v470
      %v510 = vpack.c.b16 %v473, %v472
      %v511 = vpack.c.b16 %v475, %v474
      %v512 = vpack.c.b16 %v477, %v476
      %v513 = vpack.c.b16 %v479, %v478
      %v514 = vpack.c.b16 %v481, %v480
      %v515 = vpack.c.b16 %v483, %v482
      %v518 = vunpack.c.l.b16 %v347
      %v519 = vunpack.c.l.b16 %v348
      %v520 = vpack.c.b16 %v519, %v518
      %vm521 = vcmask 72704
      %v523 = vsel %vm521, %v484, 0
      %v526 = vsel %vm521, %v485, 0
      %v529 = vsel %vm521, %v486, 0
      %v532 = vsel %vm521, %v487, 0
      %v535 = vsel %vm521, %v488, 0
      %v538 = vsel %vm521, %v489, 0
      %v541 = vsel %vm521, %v490, 0
      %v544 = vsel %vm521, %v491, 0
      %v547 = vsel %vm521, %v492, 0
      %v550 = vsel %vm521, %v493, 0
      %v553 = vsel %vm521, %v494, 0
      %v556 = vsel %vm521, %v495, 0
      %v559 = vsel %vm521, %v496, 0
      %v562 = vsel %vm521, %v497, 0
      %v565 = vsel %vm521, %v498, 0
      %v568 = vsel %vm521, %v499, 0
      %v571 = vsel %vm521, %v500, 0
      %v574 = vsel %vm521, %v501, 0
      %v577 = vsel %vm521, %v502, 0
      %v580 = vsel %vm521, %v503, 0
      %v583 = vsel %vm521, %v504, 0
      %v586 = vsel %vm521, %v505, 0
      %v589 = vsel %vm521, %v506, 0
      %v592 = vsel %vm521, %v507, 0
      %v595 = vsel %vm521, %v508, 0
      %v598 = vsel %vm521, %v509, 0
      %v601 = vsel %vm521, %v510, 0
      %v604 = vsel %vm521, %v511, 0
      %v607 = vsel %vm521, %v512, 0
      %v610 = vsel %vm521, %v513, 0
      %v613 = vsel %vm521, %v514, 0
      %v616 = vsel %vm521, %v515, 0
      %vm618 = vcmask 1043456
      %vm619 = vcmask 1044480
      %v620 = vsel %vm618, 4294967295, 65535
      %v621 = vsel %vm619, %v620, 0
      %v623 = vand.u32 %v520, %v621
      %625 = vmatprep.subr.bf16.mxu0 0
      %626 = vmatpush1.bf16.msra.mxu0 %v623
      %627 = vmatprep.subr.bf16.mxu0 0
      %628 = vmatpush1.bf16.msra.mxu0 0
      %629 = vmatprep.subr.bf16.mxu0 0
      %630 = vmatpush1.bf16.msra.mxu0 0
      %631 = vmatprep.subr.bf16.mxu0 0
      %632 = vmatpush1.bf16.msra.mxu0 0
      %633 = vmatprep.subr.bf16.mxu0 0
      %634 = vmatpush1.bf16.msra.mxu0 0
      %635 = vmatprep.subr.bf16.mxu0 0
      %636 = vmatpush1.bf16.msra.mxu0 0
      %637 = vmatprep.subr.bf16.mxu0 0
      %638 = vmatpush1.bf16.msra.mxu0 0
      %639 = vmatprep.subr.bf16.mxu0 0
      %640 = vmatpush1.bf16.msra.mxu0 0
      %641 = vmatprep.subr.bf16.mxu0 0
      %642 = vmatpush1.bf16.msra.mxu0 0
      %643 = vmatprep.subr.bf16.mxu0 0
      %644 = vmatpush1.bf16.msra.mxu0 0
      %645 = vmatprep.subr.bf16.mxu0 0
      %646 = vmatpush1.bf16.msra.mxu0 0
      %647 = vmatprep.subr.bf16.mxu0 0
      %648 = vmatpush1.bf16.msra.mxu0 0
      %649 = vmatprep.subr.bf16.mxu0 0
      %650 = vmatpush1.bf16.msra.mxu0 0
      %651 = vmatprep.subr.bf16.mxu0 0
      %652 = vmatpush1.bf16.msra.mxu0 0
      %653 = vmatprep.subr.bf16.mxu0 0
      %654 = vmatpush1.bf16.msra.mxu0 0
      %655 = vmatprep.subr.bf16.mxu0 0
      %656 = vmatpush1.bf16.msra.mxu0 0
      %657 = vmatprep.mubr.bf16.mxu0 0
      %658 = vmatmul.mubr.bf16.gmra.mrb[0].mxu0 %v523
      %v659 = vpop.f32.mrb[0].mxu0
      %v660 = vadd.f32 %v354, %v659
      %v661 = vpop.f32.mrb[0].mxu0
      %v662 = vpop.f32.mrb[0].mxu0
      %v663 = vadd.f32 %v354, %v662
      %v664 = vpop.f32.mrb[0].mxu0
      %665 = vmatprep.mubr.bf16.mxu0 0
      %666 = vmatmul.mubr.bf16.gmra.mrb[0].mxu0 %v526
      %v667 = vpop.f32.mrb[0].mxu0
      %v668 = vadd.f32 %v354, %v667
      %v669 = vpop.f32.mrb[0].mxu0
      %v670 = vpop.f32.mrb[0].mxu0
      %v671 = vadd.f32 %v354, %v670
      %v672 = vpop.f32.mrb[0].mxu0
      %673 = vmatprep.mubr.bf16.mxu0 0
      %674 = vmatmul.mubr.bf16.gmra.mrb[0].mxu0 %v529
      %v675 = vpop.f32.mrb[0].mxu0
      %v676 = vadd.f32 %v354, %v675
      %v677 = vpop.f32.mrb[0].mxu0
      %v678 = vpop.f32.mrb[0].mxu0
      %v679 = vadd.f32 %v354, %v678
      %v680 = vpop.f32.mrb[0].mxu0
      %681 = vmatprep.mubr.bf16.mxu0 0
      %682 = vmatmul.mubr.bf16.gmra.mrb[0].mxu0 %v532
      %v683 = vpop.f32.mrb[0].mxu0
      %v684 = vadd.f32 %v354, %v683
      %v685 = vpop.f32.mrb[0].mxu0
      %v686 = vpop.f32.mrb[0].mxu0
      %v687 = vadd.f32 %v354, %v686
      %v688 = vpop.f32.mrb[0].mxu0
      %689 = vmatprep.mubr.bf16.mxu0 0
      %690 = vmatmul.mubr.bf16.gmra.mrb[0].mxu0 %v535
      %v691 = vpop.f32.mrb[0].mxu0
      %v692 = vadd.f32 %v354, %v691
      %v693 = vpop.f32.mrb[0].mxu0
      %v694 = vpop.f32.mrb[0].mxu0
      %v695 = vadd.f32 %v354, %v694
      %v696 = vpop.f32.mrb[0].mxu0
      %697 = vmatprep.mubr.bf16.mxu0 0
      %698 = vmatmul.mubr.bf16.gmra.mrb[0].mxu0 %v538
      %v699 = vpop.f32.mrb[0].mxu0
      %v700 = vadd.f32 %v354, %v699
      %v701 = vpop.f32.mrb[0].mxu0
      %v702 = vpop.f32.mrb[0].mxu0
      %v703 = vadd.f32 %v354, %v702
      %v704 = vpop.f32.mrb[0].mxu0
      %705 = vmatprep.mubr.bf16.mxu0 0
      %706 = vmatmul.mubr.bf16.gmra.mrb[0].mxu0 %v541
      %v707 = vpop.f32.mrb[0].mxu0
      %v708 = vadd.f32 %v354, %v707
      %v709 = vpop.f32.mrb[0].mxu0
      %v710 = vpop.f32.mrb[0].mxu0
      %v711 = vadd.f32 %v354, %v710
      %v712 = vpop.f32.mrb[0].mxu0
      %713 = vmatprep.mubr.bf16.mxu0 0
      %714 = vmatmul.mubr.bf16.gmra.mrb[0].mxu0 %v544
      %v715 = vpop.f32.mrb[0].mxu0
      %v716 = vadd.f32 %v354, %v715
      %v717 = vpop.f32.mrb[0].mxu0
      %v718 = vpop.f32.mrb[0].mxu0
      %v719 = vadd.f32 %v354, %v718
      %v720 = vpop.f32.mrb[0].mxu0
      %721 = vmatprep.mubr.bf16.mxu0 0
      %722 = vmatmul.mubr.bf16.gmra.mrb[0].mxu0 %v547
      %v723 = vpop.f32.mrb[0].mxu0
      %v724 = vadd.f32 %v354, %v723
      %v725 = vpop.f32.mrb[0].mxu0
      %v726 = vpop.f32.mrb[0].mxu0
      %v727 = vadd.f32 %v354, %v726
      %v728 = vpop.f32.mrb[0].mxu0
      %729 = vmatprep.mubr.bf16.mxu0 0
      %730 = vmatmul.mubr.bf16.gmra.mrb[0].mxu0 %v550
      %v731 = vpop.f32.mrb[0].mxu0
      %v732 = vadd.f32 %v354, %v731
      %v733 = vpop.f32.mrb[0].mxu0
      %v734 = vpop.f32.mrb[0].mxu0
      %v735 = vadd.f32 %v354, %v734
      %v736 = vpop.f32.mrb[0].mxu0
      %737 = vmatprep.mubr.bf16.mxu0 0
      %738 = vmatmul.mubr.bf16.gmra.mrb[0].mxu0 %v553
      %v739 = vpop.f32.mrb[0].mxu0
      %v740 = vadd.f32 %v354, %v739
      %v741 = vpop.f32.mrb[0].mxu0
      %v742 = vpop.f32.mrb[0].mxu0
      %v743 = vadd.f32 %v354, %v742
      %v744 = vpop.f32.mrb[0].mxu0
      %745 = vmatprep.mubr.bf16.mxu0 0
      %746 = vmatmul.mubr.bf16.gmra.mrb[0].mxu0 %v556
      %v747 = vpop.f32.mrb[0].mxu0
      %v748 = vadd.f32 %v354, %v747
      %v749 = vpop.f32.mrb[0].mxu0
      %v750 = vpop.f32.mrb[0].mxu0
      %v751 = vadd.f32 %v354, %v750
      %v752 = vpop.f32.mrb[0].mxu0
      %753 = vmatprep.mubr.bf16.mxu0 0
      %754 = vmatmul.mubr.bf16.gmra.mrb[0].mxu0 %v559
      %v755 = vpop.f32.mrb[0].mxu0
      %v756 = vadd.f32 %v354, %v755
      %v757 = vpop.f32.mrb[0].mxu0
      %v758 = vpop.f32.mrb[0].mxu0
      %v759 = vadd.f32 %v354, %v758
      %v760 = vpop.f32.mrb[0].mxu0
      %761 = vmatprep.mubr.bf16.mxu0 0
      %762 = vmatmul.mubr.bf16.gmra.mrb[0].mxu0 %v562
      %v763 = vpop.f32.mrb[0].mxu0
      %v764 = vadd.f32 %v354, %v763
      %v765 = vpop.f32.mrb[0].mxu0
      %v766 = vpop.f32.mrb[0].mxu0
      %v767 = vadd.f32 %v354, %v766
      %v768 = vpop.f32.mrb[0].mxu0
      %769 = vmatprep.mubr.bf16.mxu0 0
      %770 = vmatmul.mubr.bf16.gmra.mrb[0].mxu0 %v565
      %v771 = vpop.f32.mrb[0].mxu0
      %v772 = vadd.f32 %v354, %v771
      %v773 = vpop.f32.mrb[0].mxu0
      %v774 = vpop.f32.mrb[0].mxu0
      %v775 = vadd.f32 %v354, %v774
      %v776 = vpop.f32.mrb[0].mxu0
      %777 = vmatprep.mubr.bf16.mxu0 0
      %778 = vmatmul.mubr.bf16.gmra.mrb[0].mxu0 %v568
      %v779 = vpop.f32.mrb[0].mxu0
      %v780 = vadd.f32 %v354, %v779
      %v781 = vpop.f32.mrb[0].mxu0
      %v782 = vpop.f32.mrb[0].mxu0
      %v783 = vadd.f32 %v354, %v782
      %v784 = vpop.f32.mrb[0].mxu0
      %785 = vmatprep.mubr.bf16.mxu0 0
      %786 = vmatmul.mubr.bf16.gmra.mrb[0].mxu0 %v571
      %v787 = vpop.f32.mrb[0].mxu0
      %v788 = vadd.f32 %v354, %v787
      %v789 = vpop.f32.mrb[0].mxu0
      %v790 = vpop.f32.mrb[0].mxu0
      %v791 = vadd.f32 %v354, %v790
      %v792 = vpop.f32.mrb[0].mxu0
      %793 = vmatprep.mubr.bf16.mxu0 0
      %794 = vmatmul.mubr.bf16.gmra.mrb[0].mxu0 %v574
      %v795 = vpop.f32.mrb[0].mxu0
      %v796 = vadd.f32 %v354, %v795
      %v797 = vpop.f32.mrb[0].mxu0
      %v798 = vpop.f32.mrb[0].mxu0
      %v799 = vadd.f32 %v354, %v798
      %v800 = vpop.f32.mrb[0].mxu0
      %801 = vmatprep.mubr.bf16.mxu0 0
      %802 = vmatmul.mubr.bf16.gmra.mrb[0].mxu0 %v577
      %v803 = vpop.f32.mrb[0].mxu0
      %v804 = vadd.f32 %v354, %v803
      %v805 = vpop.f32.mrb[0].mxu0
      %v806 = vpop.f32.mrb[0].mxu0
      %v807 = vadd.f32 %v354, %v806
      %v808 = vpop.f32.mrb[0].mxu0
      %809 = vmatprep.mubr.bf16.mxu0 0
      %810 = vmatmul.mubr.bf16.gmra.mrb[0].mxu0 %v580
      %v811 = vpop.f32.mrb[0].mxu0
      %v812 = vadd.f32 %v354, %v811
      %v813 = vpop.f32.mrb[0].mxu0
      %v814 = vpop.f32.mrb[0].mxu0
      %v815 = vadd.f32 %v354, %v814
      %v816 = vpop.f32.mrb[0].mxu0
      %817 = vmatprep.mubr.bf16.mxu0 0
      %818 = vmatmul.mubr.bf16.gmra.mrb[0].mxu0 %v583
      %v819 = vpop.f32.mrb[0].mxu0
      %v820 = vadd.f32 %v354, %v819
      %v821 = vpop.f32.mrb[0].mxu0
      %v822 = vpop.f32.mrb[0].mxu0
      %v823 = vadd.f32 %v354, %v822
      %v824 = vpop.f32.mrb[0].mxu0
      %825 = vmatprep.mubr.bf16.mxu0 0
      %826 = vmatmul.mubr.bf16.gmra.mrb[0].mxu0 %v586
      %v827 = vpop.f32.mrb[0].mxu0
      %v828 = vadd.f32 %v354, %v827
      %v829 = vpop.f32.mrb[0].mxu0
      %v830 = vpop.f32.mrb[0].mxu0
      %v831 = vadd.f32 %v354, %v830
      %v832 = vpop.f32.mrb[0].mxu0
      %833 = vmatprep.mubr.bf16.mxu0 0
      %834 = vmatmul.mubr.bf16.gmra.mrb[0].mxu0 %v589
      %v835 = vpop.f32.mrb[0].mxu0
      %v836 = vadd.f32 %v354, %v835
      %v837 = vpop.f32.mrb[0].mxu0
      %v838 = vpop.f32.mrb[0].mxu0
      %v839 = vadd.f32 %v354, %v838
      %v840 = vpop.f32.mrb[0].mxu0
      %841 = vmatprep.mubr.bf16.mxu0 0
      %842 = vmatmul.mubr.bf16.gmra.mrb[0].mxu0 %v592
      %v843 = vpop.f32.mrb[0].mxu0
      %v844 = vadd.f32 %v354, %v843
      %v845 = vpop.f32.mrb[0].mxu0
      %v846 = vpop.f32.mrb[0].mxu0
      %v847 = vadd.f32 %v354, %v846
      %v848 = vpop.f32.mrb[0].mxu0
      %849 = vmatprep.mubr.bf16.mxu0 0
      %850 = vmatmul.mubr.bf16.gmra.mrb[0].mxu0 %v595
      %v851 = vpop.f32.mrb[0].mxu0
      %v852 = vadd.f32 %v354, %v851
      %v853 = vpop.f32.mrb[0].mxu0
      %v854 = vpop.f32.mrb[0].mxu0
      %v855 = vadd.f32 %v354, %v854
      %v856 = vpop.f32.mrb[0].mxu0
      %857 = vmatprep.mubr.bf16.mxu0 0
      %858 = vmatmul.mubr.bf16.gmra.mrb[0].mxu0 %v598
      %v859 = vpop.f32.mrb[0].mxu0
      %v860 = vadd.f32 %v354, %v859
      %v861 = vpop.f32.mrb[0].mxu0
      %v862 = vpop.f32.mrb[0].mxu0
      %v863 = vadd.f32 %v354, %v862
      %v864 = vpop.f32.mrb[0].mxu0
      %865 = vmatprep.mubr.bf16.mxu0 0
      %866 = vmatmul.mubr.bf16.gmra.mrb[0].mxu0 %v601
      %v867 = vpop.f32.mrb[0].mxu0
      %v868 = vadd.f32 %v354, %v867
      %v869 = vpop.f32.mrb[0].mxu0
      %v870 = vpop.f32.mrb[0].mxu0
      %v871 = vadd.f32 %v354, %v870
      %v872 = vpop.f32.mrb[0].mxu0
      %873 = vmatprep.mubr.bf16.mxu0 0
      %874 = vmatmul.mubr.bf16.gmra.mrb[0].mxu0 %v604
      %v875 = vpop.f32.mrb[0].mxu0
      %v876 = vadd.f32 %v354, %v875
      %v877 = vpop.f32.mrb[0].mxu0
      %v878 = vpop.f32.mrb[0].mxu0
      %v879 = vadd.f32 %v354, %v878
      %v880 = vpop.f32.mrb[0].mxu0
      %881 = vmatprep.mubr.bf16.mxu0 0
      %882 = vmatmul.mubr.bf16.gmra.mrb[0].mxu0 %v607
      %v883 = vpop.f32.mrb[0].mxu0
      %v884 = vadd.f32 %v354, %v883
      %v885 = vpop.f32.mrb[0].mxu0
      %v886 = vpop.f32.mrb[0].mxu0
      %v887 = vadd.f32 %v354, %v886
      %v888 = vpop.f32.mrb[0].mxu0
      %889 = vmatprep.mubr.bf16.mxu0 0
      %890 = vmatmul.mubr.bf16.gmra.mrb[0].mxu0 %v610
      %v891 = vpop.f32.mrb[0].mxu0
      %v892 = vadd.f32 %v354, %v891
      %v893 = vpop.f32.mrb[0].mxu0
      %v894 = vpop.f32.mrb[0].mxu0
      %v895 = vadd.f32 %v354, %v894
      %v896 = vpop.f32.mrb[0].mxu0
      %897 = vmatprep.mubr.bf16.mxu0 0
      %898 = vmatmul.mubr.bf16.gmra.mrb[0].mxu0 %v613
      %v899 = vpop.f32.mrb[0].mxu0
      %v900 = vadd.f32 %v354, %v899
      %v901 = vpop.f32.mrb[0].mxu0
      %v902 = vpop.f32.mrb[0].mxu0
      %v903 = vadd.f32 %v354, %v902
      %v904 = vpop.f32.mrb[0].mxu0
      %905 = vmatprep.mubr.bf16.mxu0 0
      %906 = vmatmul.mubr.bf16.gmra.mrb[0].mxu0 %v616
      %v907 = vpop.f32.mrb[0].mxu0
      %v908 = vadd.f32 %v354, %v907
      %v909 = vpop.f32.mrb[0].mxu0
      %v910 = vpop.f32.mrb[0].mxu0
      %v911 = vadd.f32 %v354, %v910
      %v912 = vpop.f32.mrb[0].mxu0
      %913 = vdwg.mxu0
      %v914 = vmax.f32 %v660, 0.0
      %v915 = vmax.f32 %v663, 0.0
      %v916 = vmax.f32 %v668, 0.0
      %v917 = vmax.f32 %v671, 0.0
      %v918 = vmax.f32 %v676, 0.0
      %v919 = vmax.f32 %v679, 0.0
      %v920 = vmax.f32 %v684, 0.0
      %v921 = vmax.f32 %v687, 0.0
      %v922 = vmax.f32 %v692, 0.0
      %v923 = vmax.f32 %v695, 0.0
      %v924 = vmax.f32 %v700, 0.0
      %v925 = vmax.f32 %v703, 0.0
      %v926 = vmax.f32 %v708, 0.0
      %v927 = vmax.f32 %v711, 0.0
      %v928 = vmax.f32 %v716, 0.0
      %v929 = vmax.f32 %v719, 0.0
      %v930 = vmax.f32 %v724, 0.0
      %v931 = vmax.f32 %v727, 0.0
      %v932 = vmax.f32 %v732, 0.0
      %v933 = vmax.f32 %v735, 0.0
      %v934 = vmax.f32 %v740, 0.0
      %v935 = vmax.f32 %v743, 0.0
      %v936 = vmax.f32 %v748, 0.0
      %v937 = vmax.f32 %v751, 0.0
      %v938 = vmax.f32 %v756, 0.0
      %v939 = vmax.f32 %v759, 0.0
      %v940 = vmax.f32 %v764, 0.0
      %v941 = vmax.f32 %v767, 0.0
      %v942 = vmax.f32 %v772, 0.0
      %v943 = vmax.f32 %v775, 0.0
      %v944 = vmax.f32 %v780, 0.0
      %v945 = vmax.f32 %v783, 0.0
      %v946 = vmax.f32 %v788, 0.0
      %v947 = vmax.f32 %v791, 0.0
      %v948 = vmax.f32 %v796, 0.0
      %v949 = vmax.f32 %v799, 0.0
      %v950 = vmax.f32 %v804, 0.0
      %v951 = vmax.f32 %v807, 0.0
      %v952 = vmax.f32 %v812, 0.0
      %v953 = vmax.f32 %v815, 0.0
      %v954 = vmax.f32 %v820, 0.0
      %v955 = vmax.f32 %v823, 0.0
      %v956 = vmax.f32 %v828, 0.0
      %v957 = vmax.f32 %v831, 0.0
      %v958 = vmax.f32 %v836, 0.0
      %v959 = vmax.f32 %v839, 0.0
      %v960 = vmax.f32 %v844, 0.0
      %v961 = vmax.f32 %v847, 0.0
      %v962 = vmax.f32 %v852, 0.0
      %v963 = vmax.f32 %v855, 0.0
      %v964 = vmax.f32 %v860, 0.0
      %v965 = vmax.f32 %v863, 0.0
      %v966 = vmax.f32 %v868, 0.0
      %v967 = vmax.f32 %v871, 0.0
      %v968 = vmax.f32 %v876, 0.0
      %v969 = vmax.f32 %v879, 0.0
      %v970 = vmax.f32 %v884, 0.0
      %v971 = vmax.f32 %v887, 0.0
      %v972 = vmax.f32 %v892, 0.0
      %v973 = vmax.f32 %v895, 0.0
      %v974 = vmax.f32 %v900, 0.0
      %v975 = vmax.f32 %v903, 0.0
      %v976 = vmax.f32 %v908, 0.0
      %v977 = vmax.f32 %v911, 0.0
      %v978 = vpack.c.bf16 %v915, %v914
      %v979 = vpack.c.bf16 %v917, %v916
      %v980 = vpack.c.bf16 %v919, %v918
      %v981 = vpack.c.bf16 %v921, %v920
      %v982 = vpack.c.bf16 %v923, %v922
      %v983 = vpack.c.bf16 %v925, %v924
      %v984 = vpack.c.bf16 %v927, %v926
      %v985 = vpack.c.bf16 %v929, %v928
      %v986 = vpack.c.bf16 %v931, %v930
      %v987 = vpack.c.bf16 %v933, %v932
      %v988 = vpack.c.bf16 %v935, %v934
      %v989 = vpack.c.bf16 %v937, %v936
      %v990 = vpack.c.bf16 %v939, %v938
      %v991 = vpack.c.bf16 %v941, %v940
      %v992 = vpack.c.bf16 %v943, %v942
      %v993 = vpack.c.bf16 %v945, %v944
      %v994 = vpack.c.bf16 %v947, %v946
      %v995 = vpack.c.bf16 %v949, %v948
      %v996 = vpack.c.bf16 %v951, %v950
      %v997 = vpack.c.bf16 %v953, %v952
      %v998 = vpack.c.bf16 %v955, %v954
      %v999 = vpack.c.bf16 %v957, %v956
      %v1000 = vpack.c.bf16 %v959, %v958
      %v1001 = vpack.c.bf16 %v961, %v960
      %v1002 = vpack.c.bf16 %v963, %v962
      %v1003 = vpack.c.bf16 %v965, %v964
      %v1004 = vpack.c.bf16 %v967, %v966
      %v1005 = vpack.c.bf16 %v969, %v968
      %v1006 = vpack.c.bf16 %v971, %v970
      %v1007 = vpack.c.bf16 %v973, %v972
      %v1008 = vpack.c.bf16 %v975, %v974
      %v1009 = vpack.c.bf16 %v977, %v976
      %v1010 = vld [vmem:[%s3] sm:$0xf]
      %v1011 = vld [vmem:[%s3 + $0x4] sm:$0xf]
      %v1012 = vld [vmem:[%s3 + $0x8] sm:$0xf]
      %v1013 = vld [vmem:[%s3 + $0xc] sm:$0xf]
      %v1014 = vld [vmem:[%s3 + $0x10] sm:$0xf]
      %v1015 = vld [vmem:[%s3 + $0x14] sm:$0xf]
      %v1016 = vld [vmem:[%s3 + $0x18] sm:$0xf]
      %v1017 = vld [vmem:[%s3 + $0x1c] sm:$0xf]
      %v1018 = vld [vmem:[%s3 + $0x20] sm:$0xf]
      %v1019 = vld [vmem:[%s3 + $0x24] sm:$0xf]
      %v1020 = vld [vmem:[%s3 + $0x28] sm:$0xf]
      %v1021 = vld [vmem:[%s3 + $0x2c] sm:$0xf]
      %v1022 = vld [vmem:[%s3 + $0x30] sm:$0xf]
      %v1023 = vld [vmem:[%s3 + $0x34] sm:$0xf]
      %v1024 = vld [vmem:[%s3 + $0x38] sm:$0xf]
      %v1025 = vld [vmem:[%s3 + $0x3c] sm:$0xf]
      %v1026 = vld [vmem:[%s4] sm:$0x1]
      %v1028 = vlaneseq
      %v1029 = vshrl.u32 %v1028, 7
      %v1030 = vsub.s32 0, %v1029
      %v1031 = vrot.slane %v1026, %v1030
      %v1049 = vunpack.c.l.b16 %v1010
      %v1050 = vunpack.c.l.b16 %v1011
      %v1051 = vunpack.c.l.b16 %v1012
      %v1052 = vunpack.c.l.b16 %v1013
      %v1053 = vunpack.c.l.b16 %v1014
      %v1054 = vunpack.c.l.b16 %v1015
      %v1055 = vunpack.c.l.b16 %v1016
      %v1056 = vunpack.c.l.b16 %v1017
      %v1057 = vunpack.c.l.b16 %v1018
      %v1058 = vunpack.c.l.b16 %v1019
      %v1059 = vunpack.c.l.b16 %v1020
      %v1060 = vunpack.c.l.b16 %v1021
      %v1061 = vunpack.c.l.b16 %v1022
      %v1062 = vunpack.c.l.b16 %v1023
      %v1063 = vunpack.c.l.b16 %v1024
      %v1064 = vunpack.c.l.b16 %v1025
      %v1065 = vpack.c.b16 %v1050, %v1049
      %v1066 = vpack.c.b16 %v1052, %v1051
      %v1067 = vpack.c.b16 %v1054, %v1053
      %v1068 = vpack.c.b16 %v1056, %v1055
      %v1069 = vpack.c.b16 %v1058, %v1057
      %v1070 = vpack.c.b16 %v1060, %v1059
      %v1071 = vpack.c.b16 %v1062, %v1061
      %v1072 = vpack.c.b16 %v1064, %v1063
      %1081 = vmatprep.subr.bf16.mxu0 0
      %1082 = vmatpush1.bf16.msra.mxu0 %v1065
      %1083 = vmatprep.subr.bf16.mxu0 0
      %1084 = vmatpush1.bf16.msra.mxu0 %v1066
      %1085 = vmatprep.subr.bf16.mxu0 0
      %1086 = vmatpush1.bf16.msra.mxu0 %v1067
      %1087 = vmatprep.subr.bf16.mxu0 0
      %1088 = vmatpush1.bf16.msra.mxu0 %v1068
      %1089 = vmatprep.subr.bf16.mxu0 0
      %1090 = vmatpush1.bf16.msra.mxu0 %v1069
      %1091 = vmatprep.subr.bf16.mxu0 0
      %1092 = vmatpush1.bf16.msra.mxu0 %v1070
      %1093 = vmatprep.subr.bf16.mxu0 0
      %1094 = vmatpush1.bf16.msra.mxu0 %v1071
      %1095 = vmatprep.subr.bf16.mxu0 0
      %1096 = vmatpush1.bf16.msra.mxu0 %v1072
      %1097 = vmatprep.subr.bf16.mxu0 0
      %1098 = vmatpush1.bf16.msra.mxu0 0
      %1099 = vmatprep.subr.bf16.mxu0 0
      %1100 = vmatpush1.bf16.msra.mxu0 0
      %1101 = vmatprep.subr.bf16.mxu0 0
      %1102 = vmatpush1.bf16.msra.mxu0 0
      %1103 = vmatprep.subr.bf16.mxu0 0
      %1104 = vmatpush1.bf16.msra.mxu0 0
      %1105 = vmatprep.subr.bf16.mxu0 0
      %1106 = vmatpush1.bf16.msra.mxu0 0
      %1107 = vmatprep.subr.bf16.mxu0 0
      %1108 = vmatpush1.bf16.msra.mxu0 0
      %1109 = vmatprep.subr.bf16.mxu0 0
      %1110 = vmatpush1.bf16.msra.mxu0 0
      %1111 = vmatprep.subr.bf16.mxu0 0
      %1112 = vmatpush1.bf16.msra.mxu0 0
      %1113 = vmatprep.mubr.bf16.mxu0 0
      %1114 = vmatmul.mubr.bf16.gmra.mrb[0].mxu0 %v978
      %v1115 = vpop.f32.mrb[0].mxu0
      %v1116 = vadd.f32 %v1031, %v1115
      %v1117 = vpop.f32.mrb[0].mxu0
      %v1118 = vpop.f32.mrb[0].mxu0
      %v1119 = vadd.f32 %v1031, %v1118
      %v1120 = vpop.f32.mrb[0].mxu0
      %1121 = vmatprep.mubr.bf16.mxu0 0
      %1122 = vmatmul.mubr.bf16.gmra.mrb[0].mxu0 %v979
      %v1123 = vpop.f32.mrb[0].mxu0
      %v1124 = vadd.f32 %v1031, %v1123
      %v1125 = vpop.f32.mrb[0].mxu0
      %v1126 = vpop.f32.mrb[0].mxu0
      %v1127 = vadd.f32 %v1031, %v1126
      %v1128 = vpop.f32.mrb[0].mxu0
      %1129 = vmatprep.mubr.bf16.mxu0 0
      %1130 = vmatmul.mubr.bf16.gmra.mrb[0].mxu0 %v980
      %v1131 = vpop.f32.mrb[0].mxu0
      %v1132 = vadd.f32 %v1031, %v1131
      %v1133 = vpop.f32.mrb[0].mxu0
      %v1134 = vpop.f32.mrb[0].mxu0
      %v1135 = vadd.f32 %v1031, %v1134
      %v1136 = vpop.f32.mrb[0].mxu0
      %1137 = vmatprep.mubr.bf16.mxu0 0
      %1138 = vmatmul.mubr.bf16.gmra.mrb[0].mxu0 %v981
      %v1139 = vpop.f32.mrb[0].mxu0
      %v1140 = vadd.f32 %v1031, %v1139
      %v1141 = vpop.f32.mrb[0].mxu0
      %v1142 = vpop.f32.mrb[0].mxu0
      %v1143 = vadd.f32 %v1031, %v1142
      %v1144 = vpop.f32.mrb[0].mxu0
      %1145 = vmatprep.mubr.bf16.mxu0 0
      %1146 = vmatmul.mubr.bf16.gmra.mrb[0].mxu0 %v982
      %v1147 = vpop.f32.mrb[0].mxu0
      %v1148 = vadd.f32 %v1031, %v1147
      %v1149 = vpop.f32.mrb[0].mxu0
      %v1150 = vpop.f32.mrb[0].mxu0
      %v1151 = vadd.f32 %v1031, %v1150
      %v1152 = vpop.f32.mrb[0].mxu0
      %1153 = vmatprep.mubr.bf16.mxu0 0
      %1154 = vmatmul.mubr.bf16.gmra.mrb[0].mxu0 %v983
      %v1155 = vpop.f32.mrb[0].mxu0
      %v1156 = vadd.f32 %v1031, %v1155
      %v1157 = vpop.f32.mrb[0].mxu0
      %v1158 = vpop.f32.mrb[0].mxu0
      %v1159 = vadd.f32 %v1031, %v1158
      %v1160 = vpop.f32.mrb[0].mxu0
      %1161 = vmatprep.mubr.bf16.mxu0 0
      %1162 = vmatmul.mubr.bf16.gmra.mrb[0].mxu0 %v984
      %v1163 = vpop.f32.mrb[0].mxu0
      %v1164 = vadd.f32 %v1031, %v1163
      %v1165 = vpop.f32.mrb[0].mxu0
      %v1166 = vpop.f32.mrb[0].mxu0
      %v1167 = vadd.f32 %v1031, %v1166
      %v1168 = vpop.f32.mrb[0].mxu0
      %1169 = vmatprep.mubr.bf16.mxu0 0
      %1170 = vmatmul.mubr.bf16.gmra.mrb[0].mxu0 %v985
      %v1171 = vpop.f32.mrb[0].mxu0
      %v1172 = vadd.f32 %v1031, %v1171
      %v1173 = vpop.f32.mrb[0].mxu0
      %v1174 = vpop.f32.mrb[0].mxu0
      %v1175 = vadd.f32 %v1031, %v1174
      %v1176 = vpop.f32.mrb[0].mxu0
      %1177 = vmatprep.mubr.bf16.mxu0 0
      %1178 = vmatmul.mubr.bf16.gmra.mrb[0].mxu0 %v986
      %v1179 = vpop.f32.mrb[0].mxu0
      %v1180 = vadd.f32 %v1031, %v1179
      %v1181 = vpop.f32.mrb[0].mxu0
      %v1182 = vpop.f32.mrb[0].mxu0
      %v1183 = vadd.f32 %v1031, %v1182
      %v1184 = vpop.f32.mrb[0].mxu0
      %1185 = vmatprep.mubr.bf16.mxu0 0
      %1186 = vmatmul.mubr.bf16.gmra.mrb[0].mxu0 %v987
      %v1187 = vpop.f32.mrb[0].mxu0
      %v1188 = vadd.f32 %v1031, %v1187
      %v1189 = vpop.f32.mrb[0].mxu0
      %v1190 = vpop.f32.mrb[0].mxu0
      %v1191 = vadd.f32 %v1031, %v1190
      %v1192 = vpop.f32.mrb[0].mxu0
      %1193 = vmatprep.mubr.bf16.mxu0 0
      %1194 = vmatmul.mubr.bf16.gmra.mrb[0].mxu0 %v988
      %v1195 = vpop.f32.mrb[0].mxu0
      %v1196 = vadd.f32 %v1031, %v1195
      %v1197 = vpop.f32.mrb[0].mxu0
      %v1198 = vpop.f32.mrb[0].mxu0
      %v1199 = vadd.f32 %v1031, %v1198
      %v1200 = vpop.f32.mrb[0].mxu0
      %1201 = vmatprep.mubr.bf16.mxu0 0
      %1202 = vmatmul.mubr.bf16.gmra.mrb[0].mxu0 %v989
      %v1203 = vpop.f32.mrb[0].mxu0
      %v1204 = vadd.f32 %v1031, %v1203
      %v1205 = vpop.f32.mrb[0].mxu0
      %v1206 = vpop.f32.mrb[0].mxu0
      %v1207 = vadd.f32 %v1031, %v1206
      %v1208 = vpop.f32.mrb[0].mxu0
      %1209 = vmatprep.mubr.bf16.mxu0 0
      %1210 = vmatmul.mubr.bf16.gmra.mrb[0].mxu0 %v990
      %v1211 = vpop.f32.mrb[0].mxu0
      %v1212 = vadd.f32 %v1031, %v1211
      %v1213 = vpop.f32.mrb[0].mxu0
      %v1214 = vpop.f32.mrb[0].mxu0
      %v1215 = vadd.f32 %v1031, %v1214
      %v1216 = vpop.f32.mrb[0].mxu0
      %1217 = vmatprep.mubr.bf16.mxu0 0
      %1218 = vmatmul.mubr.bf16.gmra.mrb[0].mxu0 %v991
      %v1219 = vpop.f32.mrb[0].mxu0
      %v1220 = vadd.f32 %v1031, %v1219
      %v1221 = vpop.f32.mrb[0].mxu0
      %v1222 = vpop.f32.mrb[0].mxu0
      %v1223 = vadd.f32 %v1031, %v1222
      %v1224 = vpop.f32.mrb[0].mxu0
      %1225 = vmatprep.mubr.bf16.mxu0 0
      %1226 = vmatmul.mubr.bf16.gmra.mrb[0].mxu0 %v992
      %v1227 = vpop.f32.mrb[0].mxu0
      %v1228 = vadd.f32 %v1031, %v1227
      %v1229 = vpop.f32.mrb[0].mxu0
      %v1230 = vpop.f32.mrb[0].mxu0
      %v1231 = vadd.f32 %v1031, %v1230
      %v1232 = vpop.f32.mrb[0].mxu0
      %1233 = vmatprep.mubr.bf16.mxu0 0
      %1234 = vmatmul.mubr.bf16.gmra.mrb[0].mxu0 %v993
      %v1235 = vpop.f32.mrb[0].mxu0
      %v1236 = vadd.f32 %v1031, %v1235
      %v1237 = vpop.f32.mrb[0].mxu0
      %v1238 = vpop.f32.mrb[0].mxu0
      %v1239 = vadd.f32 %v1031, %v1238
      %v1240 = vpop.f32.mrb[0].mxu0
      %1241 = vmatprep.mubr.bf16.mxu0 0
      %1242 = vmatmul.mubr.bf16.gmra.mrb[0].mxu0 %v994
      %v1243 = vpop.f32.mrb[0].mxu0
      %v1244 = vadd.f32 %v1031, %v1243
      %v1245 = vpop.f32.mrb[0].mxu0
      %v1246 = vpop.f32.mrb[0].mxu0
      %v1247 = vadd.f32 %v1031, %v1246
      %v1248 = vpop.f32.mrb[0].mxu0
      %1249 = vmatprep.mubr.bf16.mxu0 0
      %1250 = vmatmul.mubr.bf16.gmra.mrb[0].mxu0 %v995
      %v1251 = vpop.f32.mrb[0].mxu0
      %v1252 = vadd.f32 %v1031, %v1251
      %v1253 = vpop.f32.mrb[0].mxu0
      %v1254 = vpop.f32.mrb[0].mxu0
      %v1255 = vadd.f32 %v1031, %v1254
      %v1256 = vpop.f32.mrb[0].mxu0
      %1257 = vmatprep.mubr.bf16.mxu0 0
      %1258 = vmatmul.mubr.bf16.gmra.mrb[0].mxu0 %v996
      %v1259 = vpop.f32.mrb[0].mxu0
      %v1260 = vadd.f32 %v1031, %v1259
      %v1261 = vpop.f32.mrb[0].mxu0
      %v1262 = vpop.f32.mrb[0].mxu0
      %v1263 = vadd.f32 %v1031, %v1262
      %v1264 = vpop.f32.mrb[0].mxu0
      %1265 = vmatprep.mubr.bf16.mxu0 0
      %1266 = vmatmul.mubr.bf16.gmra.mrb[0].mxu0 %v997
      %v1267 = vpop.f32.mrb[0].mxu0
      %v1268 = vadd.f32 %v1031, %v1267
      %v1269 = vpop.f32.mrb[0].mxu0
      %v1270 = vpop.f32.mrb[0].mxu0
      %v1271 = vadd.f32 %v1031, %v1270
      %v1272 = vpop.f32.mrb[0].mxu0
      %1273 = vmatprep.mubr.bf16.mxu0 0
      %1274 = vmatmul.mubr.bf16.gmra.mrb[0].mxu0 %v998
      %v1275 = vpop.f32.mrb[0].mxu0
      %v1276 = vadd.f32 %v1031, %v1275
      %v1277 = vpop.f32.mrb[0].mxu0
      %v1278 = vpop.f32.mrb[0].mxu0
      %v1279 = vadd.f32 %v1031, %v1278
      %v1280 = vpop.f32.mrb[0].mxu0
      %1281 = vmatprep.mubr.bf16.mxu0 0
      %1282 = vmatmul.mubr.bf16.gmra.mrb[0].mxu0 %v999
      %v1283 = vpop.f32.mrb[0].mxu0
      %v1284 = vadd.f32 %v1031, %v1283
      %v1285 = vpop.f32.mrb[0].mxu0
      %v1286 = vpop.f32.mrb[0].mxu0
      %v1287 = vadd.f32 %v1031, %v1286
      %v1288 = vpop.f32.mrb[0].mxu0
      %1289 = vmatprep.mubr.bf16.mxu0 0
      %1290 = vmatmul.mubr.bf16.gmra.mrb[0].mxu0 %v1000
      %v1291 = vpop.f32.mrb[0].mxu0
      %v1292 = vadd.f32 %v1031, %v1291
      %v1293 = vpop.f32.mrb[0].mxu0
      %v1294 = vpop.f32.mrb[0].mxu0
      %v1295 = vadd.f32 %v1031, %v1294
      %v1296 = vpop.f32.mrb[0].mxu0
      %1297 = vmatprep.mubr.bf16.mxu0 0
      %1298 = vmatmul.mubr.bf16.gmra.mrb[0].mxu0 %v1001
      %v1299 = vpop.f32.mrb[0].mxu0
      %v1300 = vadd.f32 %v1031, %v1299
      %v1301 = vpop.f32.mrb[0].mxu0
      %v1302 = vpop.f32.mrb[0].mxu0
      %v1303 = vadd.f32 %v1031, %v1302
      %v1304 = vpop.f32.mrb[0].mxu0
      %1305 = vmatprep.mubr.bf16.mxu0 0
      %1306 = vmatmul.mubr.bf16.gmra.mrb[0].mxu0 %v1002
      %v1307 = vpop.f32.mrb[0].mxu0
      %v1308 = vadd.f32 %v1031, %v1307
      %v1309 = vpop.f32.mrb[0].mxu0
      %v1310 = vpop.f32.mrb[0].mxu0
      %v1311 = vadd.f32 %v1031, %v1310
      %v1312 = vpop.f32.mrb[0].mxu0
      %1313 = vmatprep.mubr.bf16.mxu0 0
      %1314 = vmatmul.mubr.bf16.gmra.mrb[0].mxu0 %v1003
      %v1315 = vpop.f32.mrb[0].mxu0
      %v1316 = vadd.f32 %v1031, %v1315
      %v1317 = vpop.f32.mrb[0].mxu0
      %v1318 = vpop.f32.mrb[0].mxu0
      %v1319 = vadd.f32 %v1031, %v1318
      %v1320 = vpop.f32.mrb[0].mxu0
      %1321 = vmatprep.mubr.bf16.mxu0 0
      %1322 = vmatmul.mubr.bf16.gmra.mrb[0].mxu0 %v1004
      %v1323 = vpop.f32.mrb[0].mxu0
      %v1324 = vadd.f32 %v1031, %v1323
      %v1325 = vpop.f32.mrb[0].mxu0
      %v1326 = vpop.f32.mrb[0].mxu0
      %v1327 = vadd.f32 %v1031, %v1326
      %v1328 = vpop.f32.mrb[0].mxu0
      %1329 = vmatprep.mubr.bf16.mxu0 0
      %1330 = vmatmul.mubr.bf16.gmra.mrb[0].mxu0 %v1005
      %v1331 = vpop.f32.mrb[0].mxu0
      %v1332 = vadd.f32 %v1031, %v1331
      %v1333 = vpop.f32.mrb[0].mxu0
      %v1334 = vpop.f32.mrb[0].mxu0
      %v1335 = vadd.f32 %v1031, %v1334
      %v1336 = vpop.f32.mrb[0].mxu0
      %1337 = vmatprep.mubr.bf16.mxu0 0
      %1338 = vmatmul.mubr.bf16.gmra.mrb[0].mxu0 %v1006
      %v1339 = vpop.f32.mrb[0].mxu0
      %v1340 = vadd.f32 %v1031, %v1339
      %v1341 = vpop.f32.mrb[0].mxu0
      %v1342 = vpop.f32.mrb[0].mxu0
      %v1343 = vadd.f32 %v1031, %v1342
      %v1344 = vpop.f32.mrb[0].mxu0
      %1345 = vmatprep.mubr.bf16.mxu0 0
      %1346 = vmatmul.mubr.bf16.gmra.mrb[0].mxu0 %v1007
      %v1347 = vpop.f32.mrb[0].mxu0
      %v1348 = vadd.f32 %v1031, %v1347
      %v1349 = vpop.f32.mrb[0].mxu0
      %v1350 = vpop.f32.mrb[0].mxu0
      %v1351 = vadd.f32 %v1031, %v1350
      %v1352 = vpop.f32.mrb[0].mxu0
      %1353 = vmatprep.mubr.bf16.mxu0 0
      %1354 = vmatmul.mubr.bf16.gmra.mrb[0].mxu0 %v1008
      %v1355 = vpop.f32.mrb[0].mxu0
      %v1356 = vadd.f32 %v1031, %v1355
      %v1357 = vpop.f32.mrb[0].mxu0
      %v1358 = vpop.f32.mrb[0].mxu0
      %v1359 = vadd.f32 %v1031, %v1358
      %v1360 = vpop.f32.mrb[0].mxu0
      %1361 = vmatprep.mubr.bf16.mxu0 0
      %1362 = vmatmul.mubr.bf16.gmra.mrb[0].mxu0 %v1009
      %v1363 = vpop.f32.mrb[0].mxu0
      %v1364 = vadd.f32 %v1031, %v1363
      %v1365 = vpop.f32.mrb[0].mxu0
      %v1366 = vpop.f32.mrb[0].mxu0
      %v1367 = vadd.f32 %v1031, %v1366
      %v1368 = vpop.f32.mrb[0].mxu0
      %1369 = vdwg.mxu0
      %v1370 = vmax.f32 %v1116, 0.0
      %v1371 = vmax.f32 %v1119, 0.0
      %v1372 = vmax.f32 %v1124, 0.0
      %v1373 = vmax.f32 %v1127, 0.0
      %v1374 = vmax.f32 %v1132, 0.0
      %v1375 = vmax.f32 %v1135, 0.0
      %v1376 = vmax.f32 %v1140, 0.0
      %v1377 = vmax.f32 %v1143, 0.0
      %v1378 = vmax.f32 %v1148, 0.0
      %v1379 = vmax.f32 %v1151, 0.0
      %v1380 = vmax.f32 %v1156, 0.0
      %v1381 = vmax.f32 %v1159, 0.0
      %v1382 = vmax.f32 %v1164, 0.0
      %v1383 = vmax.f32 %v1167, 0.0
      %v1384 = vmax.f32 %v1172, 0.0
      %v1385 = vmax.f32 %v1175, 0.0
      %v1386 = vmax.f32 %v1180, 0.0
      %v1387 = vmax.f32 %v1183, 0.0
      %v1388 = vmax.f32 %v1188, 0.0
      %v1389 = vmax.f32 %v1191, 0.0
      %v1390 = vmax.f32 %v1196, 0.0
      %v1391 = vmax.f32 %v1199, 0.0
      %v1392 = vmax.f32 %v1204, 0.0
      %v1393 = vmax.f32 %v1207, 0.0
      %v1394 = vmax.f32 %v1212, 0.0
      %v1395 = vmax.f32 %v1215, 0.0
      %v1396 = vmax.f32 %v1220, 0.0
      %v1397 = vmax.f32 %v1223, 0.0
      %v1398 = vmax.f32 %v1228, 0.0
      %v1399 = vmax.f32 %v1231, 0.0
      %v1400 = vmax.f32 %v1236, 0.0
      %v1401 = vmax.f32 %v1239, 0.0
      %v1402 = vmax.f32 %v1244, 0.0
      %v1403 = vmax.f32 %v1247, 0.0
      %v1404 = vmax.f32 %v1252, 0.0
      %v1405 = vmax.f32 %v1255, 0.0
      %v1406 = vmax.f32 %v1260, 0.0
      %v1407 = vmax.f32 %v1263, 0.0
      %v1408 = vmax.f32 %v1268, 0.0
      %v1409 = vmax.f32 %v1271, 0.0
      %v1410 = vmax.f32 %v1276, 0.0
      %v1411 = vmax.f32 %v1279, 0.0
      %v1412 = vmax.f32 %v1284, 0.0
      %v1413 = vmax.f32 %v1287, 0.0
      %v1414 = vmax.f32 %v1292, 0.0
      %v1415 = vmax.f32 %v1295, 0.0
      %v1416 = vmax.f32 %v1300, 0.0
      %v1417 = vmax.f32 %v1303, 0.0
      %v1418 = vmax.f32 %v1308, 0.0
      %v1419 = vmax.f32 %v1311, 0.0
      %v1420 = vmax.f32 %v1316, 0.0
      %v1421 = vmax.f32 %v1319, 0.0
      %v1422 = vmax.f32 %v1324, 0.0
      %v1423 = vmax.f32 %v1327, 0.0
      %v1424 = vmax.f32 %v1332, 0.0
      %v1425 = vmax.f32 %v1335, 0.0
      %v1426 = vmax.f32 %v1340, 0.0
      %v1427 = vmax.f32 %v1343, 0.0
      %v1428 = vmax.f32 %v1348, 0.0
      %v1429 = vmax.f32 %v1351, 0.0
      %v1430 = vmax.f32 %v1356, 0.0
      %v1431 = vmax.f32 %v1359, 0.0
      %v1432 = vmax.f32 %v1364, 0.0
      %v1433 = vmax.f32 %v1367, 0.0
      %v1434 = vrot.slane %v1370, 4
      %v1435 = vadd.f32 %v1370, %v1434
      %v1436 = vrot.slane %v1435, 2
      %v1437 = vadd.f32 %v1435, %v1436
      %v1438 = vrot.slane %v1437, 1
      %v1439 = vadd.f32 %v1437, %v1438
      %v1440 = vrot.slane %v1371, 4
      %v1441 = vadd.f32 %v1371, %v1440
      %v1442 = vrot.slane %v1441, 2
      %v1443 = vadd.f32 %v1441, %v1442
      %v1444 = vrot.slane %v1443, 1
      %v1445 = vadd.f32 %v1443, %v1444
      %v1446 = vrot.slane %v1372, 4
      %v1447 = vadd.f32 %v1372, %v1446
      %v1448 = vrot.slane %v1447, 2
      %v1449 = vadd.f32 %v1447, %v1448
      %v1450 = vrot.slane %v1449, 1
      %v1451 = vadd.f32 %v1449, %v1450
      %v1452 = vrot.slane %v1373, 4
      %v1453 = vadd.f32 %v1373, %v1452
      %v1454 = vrot.slane %v1453, 2
      %v1455 = vadd.f32 %v1453, %v1454
      %v1456 = vrot.slane %v1455, 1
      %v1457 = vadd.f32 %v1455, %v1456
      %v1458 = vrot.slane %v1374, 4
      %v1459 = vadd.f32 %v1374, %v1458
      %v1460 = vrot.slane %v1459, 2
      %v1461 = vadd.f32 %v1459, %v1460
      %v1462 = vrot.slane %v1461, 1
      %v1463 = vadd.f32 %v1461, %v1462
      %v1464 = vrot.slane %v1375, 4
      %v1465 = vadd.f32 %v1375, %v1464
      %v1466 = vrot.slane %v1465, 2
      %v1467 = vadd.f32 %v1465, %v1466
      %v1468 = vrot.slane %v1467, 1
      %v1469 = vadd.f32 %v1467, %v1468
      %v1470 = vrot.slane %v1376, 4
      %v1471 = vadd.f32 %v1376, %v1470
      %v1472 = vrot.slane %v1471, 2
      %v1473 = vadd.f32 %v1471, %v1472
      %v1474 = vrot.slane %v1473, 1
      %v1475 = vadd.f32 %v1473, %v1474
      %v1476 = vrot.slane %v1377, 4
      %v1477 = vadd.f32 %v1377, %v1476
      %v1478 = vrot.slane %v1477, 2
      %v1479 = vadd.f32 %v1477, %v1478
      %v1480 = vrot.slane %v1479, 1
      %v1481 = vadd.f32 %v1479, %v1480
      %v1482 = vrot.slane %v1378, 4
      %v1483 = vadd.f32 %v1378, %v1482
      %v1484 = vrot.slane %v1483, 2
      %v1485 = vadd.f32 %v1483, %v1484
      %v1486 = vrot.slane %v1485, 1
      %v1487 = vadd.f32 %v1485, %v1486
      %v1488 = vrot.slane %v1379, 4
      %v1489 = vadd.f32 %v1379, %v1488
      %v1490 = vrot.slane %v1489, 2
      %v1491 = vadd.f32 %v1489, %v1490
      %v1492 = vrot.slane %v1491, 1
      %v1493 = vadd.f32 %v1491, %v1492
      %v1494 = vrot.slane %v1380, 4
      %v1495 = vadd.f32 %v1380, %v1494
      %v1496 = vrot.slane %v1495, 2
      %v1497 = vadd.f32 %v1495, %v1496
      %v1498 = vrot.slane %v1497, 1
      %v1499 = vadd.f32 %v1497, %v1498
      %v1500 = vrot.slane %v1381, 4
      %v1501 = vadd.f32 %v1381, %v1500
      %v1502 = vrot.slane %v1501, 2
      %v1503 = vadd.f32 %v1501, %v1502
      %v1504 = vrot.slane %v1503, 1
      %v1505 = vadd.f32 %v1503, %v1504
      %v1506 = vrot.slane %v1382, 4
      %v1507 = vadd.f32 %v1382, %v1506
      %v1508 = vrot.slane %v1507, 2
      %v1509 = vadd.f32 %v1507, %v1508
      %v1510 = vrot.slane %v1509, 1
      %v1511 = vadd.f32 %v1509, %v1510
      %v1512 = vrot.slane %v1383, 4
      %v1513 = vadd.f32 %v1383, %v1512
      %v1514 = vrot.slane %v1513, 2
      %v1515 = vadd.f32 %v1513, %v1514
      %v1516 = vrot.slane %v1515, 1
      %v1517 = vadd.f32 %v1515, %v1516
      %v1518 = vrot.slane %v1384, 4
      %v1519 = vadd.f32 %v1384, %v1518
      %v1520 = vrot.slane %v1519, 2
      %v1521 = vadd.f32 %v1519, %v1520
      %v1522 = vrot.slane %v1521, 1
      %v1523 = vadd.f32 %v1521, %v1522
      %v1524 = vrot.slane %v1385, 4
      %v1525 = vadd.f32 %v1385, %v1524
      %v1526 = vrot.slane %v1525, 2
      %v1527 = vadd.f32 %v1525, %v1526
      %v1528 = vrot.slane %v1527, 1
      %v1529 = vadd.f32 %v1527, %v1528
      %v1530 = vrot.slane %v1386, 4
      %v1531 = vadd.f32 %v1386, %v1530
      %v1532 = vrot.slane %v1531, 2
      %v1533 = vadd.f32 %v1531, %v1532
      %v1534 = vrot.slane %v1533, 1
      %v1535 = vadd.f32 %v1533, %v1534
      %v1536 = vrot.slane %v1387, 4
      %v1537 = vadd.f32 %v1387, %v1536
      %v1538 = vrot.slane %v1537, 2
      %v1539 = vadd.f32 %v1537, %v1538
      %v1540 = vrot.slane %v1539, 1
      %v1541 = vadd.f32 %v1539, %v1540
      %v1542 = vrot.slane %v1388, 4
      %v1543 = vadd.f32 %v1388, %v1542
      %v1544 = vrot.slane %v1543, 2
      %v1545 = vadd.f32 %v1543, %v1544
      %v1546 = vrot.slane %v1545, 1
      %v1547 = vadd.f32 %v1545, %v1546
      %v1548 = vrot.slane %v1389, 4
      %v1549 = vadd.f32 %v1389, %v1548
      %v1550 = vrot.slane %v1549, 2
      %v1551 = vadd.f32 %v1549, %v1550
      %v1552 = vrot.slane %v1551, 1
      %v1553 = vadd.f32 %v1551, %v1552
      %v1554 = vrot.slane %v1390, 4
      %v1555 = vadd.f32 %v1390, %v1554
      %v1556 = vrot.slane %v1555, 2
      %v1557 = vadd.f32 %v1555, %v1556
      %v1558 = vrot.slane %v1557, 1
      %v1559 = vadd.f32 %v1557, %v1558
      %v1560 = vrot.slane %v1391, 4
      %v1561 = vadd.f32 %v1391, %v1560
      %v1562 = vrot.slane %v1561, 2
      %v1563 = vadd.f32 %v1561, %v1562
      %v1564 = vrot.slane %v1563, 1
      %v1565 = vadd.f32 %v1563, %v1564
      %v1566 = vrot.slane %v1392, 4
      %v1567 = vadd.f32 %v1392, %v1566
      %v1568 = vrot.slane %v1567, 2
      %v1569 = vadd.f32 %v1567, %v1568
      %v1570 = vrot.slane %v1569, 1
      %v1571 = vadd.f32 %v1569, %v1570
      %v1572 = vrot.slane %v1393, 4
      %v1573 = vadd.f32 %v1393, %v1572
      %v1574 = vrot.slane %v1573, 2
      %v1575 = vadd.f32 %v1573, %v1574
      %v1576 = vrot.slane %v1575, 1
      %v1577 = vadd.f32 %v1575, %v1576
      %v1578 = vrot.slane %v1394, 4
      %v1579 = vadd.f32 %v1394, %v1578
      %v1580 = vrot.slane %v1579, 2
      %v1581 = vadd.f32 %v1579, %v1580
      %v1582 = vrot.slane %v1581, 1
      %v1583 = vadd.f32 %v1581, %v1582
      %v1584 = vrot.slane %v1395, 4
      %v1585 = vadd.f32 %v1395, %v1584
      %v1586 = vrot.slane %v1585, 2
      %v1587 = vadd.f32 %v1585, %v1586
      %v1588 = vrot.slane %v1587, 1
      %v1589 = vadd.f32 %v1587, %v1588
      %v1590 = vrot.slane %v1396, 4
      %v1591 = vadd.f32 %v1396, %v1590
      %v1592 = vrot.slane %v1591, 2
      %v1593 = vadd.f32 %v1591, %v1592
      %v1594 = vrot.slane %v1593, 1
      %v1595 = vadd.f32 %v1593, %v1594
      %v1596 = vrot.slane %v1397, 4
      %v1597 = vadd.f32 %v1397, %v1596
      %v1598 = vrot.slane %v1597, 2
      %v1599 = vadd.f32 %v1597, %v1598
      %v1600 = vrot.slane %v1599, 1
      %v1601 = vadd.f32 %v1599, %v1600
      %v1602 = vrot.slane %v1398, 4
      %v1603 = vadd.f32 %v1398, %v1602
      %v1604 = vrot.slane %v1603, 2
      %v1605 = vadd.f32 %v1603, %v1604
      %v1606 = vrot.slane %v1605, 1
      %v1607 = vadd.f32 %v1605, %v1606
      %v1608 = vrot.slane %v1399, 4
      %v1609 = vadd.f32 %v1399, %v1608
      %v1610 = vrot.slane %v1609, 2
      %v1611 = vadd.f32 %v1609, %v1610
      %v1612 = vrot.slane %v1611, 1
      %v1613 = vadd.f32 %v1611, %v1612
      %v1614 = vrot.slane %v1400, 4
      %v1615 = vadd.f32 %v1400, %v1614
      %v1616 = vrot.slane %v1615, 2
      %v1617 = vadd.f32 %v1615, %v1616
      %v1618 = vrot.slane %v1617, 1
      %v1619 = vadd.f32 %v1617, %v1618
      %v1620 = vrot.slane %v1401, 4
      %v1621 = vadd.f32 %v1401, %v1620
      %v1622 = vrot.slane %v1621, 2
      %v1623 = vadd.f32 %v1621, %v1622
      %v1624 = vrot.slane %v1623, 1
      %v1625 = vadd.f32 %v1623, %v1624
      %v1626 = vrot.slane %v1402, 4
      %v1627 = vadd.f32 %v1402, %v1626
      %v1628 = vrot.slane %v1627, 2
      %v1629 = vadd.f32 %v1627, %v1628
      %v1630 = vrot.slane %v1629, 1
      %v1631 = vadd.f32 %v1629, %v1630
      %v1632 = vrot.slane %v1403, 4
      %v1633 = vadd.f32 %v1403, %v1632
      %v1634 = vrot.slane %v1633, 2
      %v1635 = vadd.f32 %v1633, %v1634
      %v1636 = vrot.slane %v1635, 1
      %v1637 = vadd.f32 %v1635, %v1636
      %v1638 = vrot.slane %v1404, 4
      %v1639 = vadd.f32 %v1404, %v1638
      %v1640 = vrot.slane %v1639, 2
      %v1641 = vadd.f32 %v1639, %v1640
      %v1642 = vrot.slane %v1641, 1
      %v1643 = vadd.f32 %v1641, %v1642
      %v1644 = vrot.slane %v1405, 4
      %v1645 = vadd.f32 %v1405, %v1644
      %v1646 = vrot.slane %v1645, 2
      %v1647 = vadd.f32 %v1645, %v1646
      %v1648 = vrot.slane %v1647, 1
      %v1649 = vadd.f32 %v1647, %v1648
      %v1650 = vrot.slane %v1406, 4
      %v1651 = vadd.f32 %v1406, %v1650
      %v1652 = vrot.slane %v1651, 2
      %v1653 = vadd.f32 %v1651, %v1652
      %v1654 = vrot.slane %v1653, 1
      %v1655 = vadd.f32 %v1653, %v1654
      %v1656 = vrot.slane %v1407, 4
      %v1657 = vadd.f32 %v1407, %v1656
      %v1658 = vrot.slane %v1657, 2
      %v1659 = vadd.f32 %v1657, %v1658
      %v1660 = vrot.slane %v1659, 1
      %v1661 = vadd.f32 %v1659, %v1660
      %v1662 = vrot.slane %v1408, 4
      %v1663 = vadd.f32 %v1408, %v1662
      %v1664 = vrot.slane %v1663, 2
      %v1665 = vadd.f32 %v1663, %v1664
      %v1666 = vrot.slane %v1665, 1
      %v1667 = vadd.f32 %v1665, %v1666
      %v1668 = vrot.slane %v1409, 4
      %v1669 = vadd.f32 %v1409, %v1668
      %v1670 = vrot.slane %v1669, 2
      %v1671 = vadd.f32 %v1669, %v1670
      %v1672 = vrot.slane %v1671, 1
      %v1673 = vadd.f32 %v1671, %v1672
      %v1674 = vrot.slane %v1410, 4
      %v1675 = vadd.f32 %v1410, %v1674
      %v1676 = vrot.slane %v1675, 2
      %v1677 = vadd.f32 %v1675, %v1676
      %v1678 = vrot.slane %v1677, 1
      %v1679 = vadd.f32 %v1677, %v1678
      %v1680 = vrot.slane %v1411, 4
      %v1681 = vadd.f32 %v1411, %v1680
      %v1682 = vrot.slane %v1681, 2
      %v1683 = vadd.f32 %v1681, %v1682
      %v1684 = vrot.slane %v1683, 1
      %v1685 = vadd.f32 %v1683, %v1684
      %v1686 = vrot.slane %v1412, 4
      %v1687 = vadd.f32 %v1412, %v1686
      %v1688 = vrot.slane %v1687, 2
      %v1689 = vadd.f32 %v1687, %v1688
      %v1690 = vrot.slane %v1689, 1
      %v1691 = vadd.f32 %v1689, %v1690
      %v1692 = vrot.slane %v1413, 4
      %v1693 = vadd.f32 %v1413, %v1692
      %v1694 = vrot.slane %v1693, 2
      %v1695 = vadd.f32 %v1693, %v1694
      %v1696 = vrot.slane %v1695, 1
      %v1697 = vadd.f32 %v1695, %v1696
      %v1698 = vrot.slane %v1414, 4
      %v1699 = vadd.f32 %v1414, %v1698
      %v1700 = vrot.slane %v1699, 2
      %v1701 = vadd.f32 %v1699, %v1700
      %v1702 = vrot.slane %v1701, 1
      %v1703 = vadd.f32 %v1701, %v1702
      %v1704 = vrot.slane %v1415, 4
      %v1705 = vadd.f32 %v1415, %v1704
      %v1706 = vrot.slane %v1705, 2
      %v1707 = vadd.f32 %v1705, %v1706
      %v1708 = vrot.slane %v1707, 1
      %v1709 = vadd.f32 %v1707, %v1708
      %v1710 = vrot.slane %v1416, 4
      %v1711 = vadd.f32 %v1416, %v1710
      %v1712 = vrot.slane %v1711, 2
      %v1713 = vadd.f32 %v1711, %v1712
      %v1714 = vrot.slane %v1713, 1
      %v1715 = vadd.f32 %v1713, %v1714
      %v1716 = vrot.slane %v1417, 4
      %v1717 = vadd.f32 %v1417, %v1716
      %v1718 = vrot.slane %v1717, 2
      %v1719 = vadd.f32 %v1717, %v1718
      %v1720 = vrot.slane %v1719, 1
      %v1721 = vadd.f32 %v1719, %v1720
      %v1722 = vrot.slane %v1418, 4
      %v1723 = vadd.f32 %v1418, %v1722
      %v1724 = vrot.slane %v1723, 2
      %v1725 = vadd.f32 %v1723, %v1724
      %v1726 = vrot.slane %v1725, 1
      %v1727 = vadd.f32 %v1725, %v1726
      %v1728 = vrot.slane %v1419, 4
      %v1729 = vadd.f32 %v1419, %v1728
      %v1730 = vrot.slane %v1729, 2
      %v1731 = vadd.f32 %v1729, %v1730
      %v1732 = vrot.slane %v1731, 1
      %v1733 = vadd.f32 %v1731, %v1732
      %v1734 = vrot.slane %v1420, 4
      %v1735 = vadd.f32 %v1420, %v1734
      %v1736 = vrot.slane %v1735, 2
      %v1737 = vadd.f32 %v1735, %v1736
      %v1738 = vrot.slane %v1737, 1
      %v1739 = vadd.f32 %v1737, %v1738
      %v1740 = vrot.slane %v1421, 4
      %v1741 = vadd.f32 %v1421, %v1740
      %v1742 = vrot.slane %v1741, 2
      %v1743 = vadd.f32 %v1741, %v1742
      %v1744 = vrot.slane %v1743, 1
      %v1745 = vadd.f32 %v1743, %v1744
      %v1746 = vrot.slane %v1422, 4
      %v1747 = vadd.f32 %v1422, %v1746
      %v1748 = vrot.slane %v1747, 2
      %v1749 = vadd.f32 %v1747, %v1748
      %v1750 = vrot.slane %v1749, 1
      %v1751 = vadd.f32 %v1749, %v1750
      %v1752 = vrot.slane %v1423, 4
      %v1753 = vadd.f32 %v1423, %v1752
      %v1754 = vrot.slane %v1753, 2
      %v1755 = vadd.f32 %v1753, %v1754
      %v1756 = vrot.slane %v1755, 1
      %v1757 = vadd.f32 %v1755, %v1756
      %v1758 = vrot.slane %v1424, 4
      %v1759 = vadd.f32 %v1424, %v1758
      %v1760 = vrot.slane %v1759, 2
      %v1761 = vadd.f32 %v1759, %v1760
      %v1762 = vrot.slane %v1761, 1
      %v1763 = vadd.f32 %v1761, %v1762
      %v1764 = vrot.slane %v1425, 4
      %v1765 = vadd.f32 %v1425, %v1764
      %v1766 = vrot.slane %v1765, 2
      %v1767 = vadd.f32 %v1765, %v1766
      %v1768 = vrot.slane %v1767, 1
      %v1769 = vadd.f32 %v1767, %v1768
      %v1770 = vrot.slane %v1426, 4
      %v1771 = vadd.f32 %v1426, %v1770
      %v1772 = vrot.slane %v1771, 2
      %v1773 = vadd.f32 %v1771, %v1772
      %v1774 = vrot.slane %v1773, 1
      %v1775 = vadd.f32 %v1773, %v1774
      %v1776 = vrot.slane %v1427, 4
      %v1777 = vadd.f32 %v1427, %v1776
      %v1778 = vrot.slane %v1777, 2
      %v1779 = vadd.f32 %v1777, %v1778
      %v1780 = vrot.slane %v1779, 1
      %v1781 = vadd.f32 %v1779, %v1780
      %v1782 = vrot.slane %v1428, 4
      %v1783 = vadd.f32 %v1428, %v1782
      %v1784 = vrot.slane %v1783, 2
      %v1785 = vadd.f32 %v1783, %v1784
      %v1786 = vrot.slane %v1785, 1
      %v1787 = vadd.f32 %v1785, %v1786
      %v1788 = vrot.slane %v1429, 4
      %v1789 = vadd.f32 %v1429, %v1788
      %v1790 = vrot.slane %v1789, 2
      %v1791 = vadd.f32 %v1789, %v1790
      %v1792 = vrot.slane %v1791, 1
      %v1793 = vadd.f32 %v1791, %v1792
      %v1794 = vrot.slane %v1430, 4
      %v1795 = vadd.f32 %v1430, %v1794
      %v1796 = vrot.slane %v1795, 2
      %v1797 = vadd.f32 %v1795, %v1796
      %v1798 = vrot.slane %v1797, 1
      %v1799 = vadd.f32 %v1797, %v1798
      %v1800 = vrot.slane %v1431, 4
      %v1801 = vadd.f32 %v1431, %v1800
      %v1802 = vrot.slane %v1801, 2
      %v1803 = vadd.f32 %v1801, %v1802
      %v1804 = vrot.slane %v1803, 1
      %v1805 = vadd.f32 %v1803, %v1804
      %v1806 = vrot.slane %v1432, 4
      %v1807 = vadd.f32 %v1432, %v1806
      %v1808 = vrot.slane %v1807, 2
      %v1809 = vadd.f32 %v1807, %v1808
      %v1810 = vrot.slane %v1809, 1
      %v1811 = vadd.f32 %v1809, %v1810
      %v1812 = vrot.slane %v1433, 4
      %v1813 = vadd.f32 %v1433, %v1812
      %v1814 = vrot.slane %v1813, 2
      %v1815 = vadd.f32 %v1813, %v1814
      %v1816 = vrot.slane %v1815, 1
      %v1817 = vadd.f32 %v1815, %v1816
      %v1818 = vld [vmem:[%s6] sm:$0x1]
      %v1819 = vmul.f32 %v1818, 8.0
      %v1820 = vpack.c.bf16 %v1439, %v1439
      %v1821 = vpack.c.bf16 %v1445, %v1445
      %v1822 = vpack.c.bf16 %v1451, %v1451
      %v1823 = vpack.c.bf16 %v1457, %v1457
      %v1824 = vpack.c.bf16 %v1463, %v1463
      %v1825 = vpack.c.bf16 %v1469, %v1469
      %v1826 = vpack.c.bf16 %v1475, %v1475
      %v1827 = vpack.c.bf16 %v1481, %v1481
      %v1828 = vpack.c.bf16 %v1487, %v1487
      %v1829 = vpack.c.bf16 %v1493, %v1493
      %v1830 = vpack.c.bf16 %v1499, %v1499
      %v1831 = vpack.c.bf16 %v1505, %v1505
      %v1832 = vpack.c.bf16 %v1511, %v1511
      %v1833 = vpack.c.bf16 %v1517, %v1517
      %v1834 = vpack.c.bf16 %v1523, %v1523
      %v1835 = vpack.c.bf16 %v1529, %v1529
      %v1836 = vpack.c.bf16 %v1535, %v1535
      %v1837 = vpack.c.bf16 %v1541, %v1541
      %v1838 = vpack.c.bf16 %v1547, %v1547
      %v1839 = vpack.c.bf16 %v1553, %v1553
      %v1840 = vpack.c.bf16 %v1559, %v1559
      %v1841 = vpack.c.bf16 %v1565, %v1565
      %v1842 = vpack.c.bf16 %v1571, %v1571
      %v1843 = vpack.c.bf16 %v1577, %v1577
      %v1844 = vpack.c.bf16 %v1583, %v1583
      %v1845 = vpack.c.bf16 %v1589, %v1589
      %v1846 = vpack.c.bf16 %v1595, %v1595
      %v1847 = vpack.c.bf16 %v1601, %v1601
      %v1848 = vpack.c.bf16 %v1607, %v1607
      %v1849 = vpack.c.bf16 %v1613, %v1613
      %v1850 = vpack.c.bf16 %v1619, %v1619
      %v1851 = vpack.c.bf16 %v1625, %v1625
      %v1852 = vpack.c.bf16 %v1631, %v1631
      %v1853 = vpack.c.bf16 %v1637, %v1637
      %v1854 = vpack.c.bf16 %v1643, %v1643
      %v1855 = vpack.c.bf16 %v1649, %v1649
      %v1856 = vpack.c.bf16 %v1655, %v1655
      %v1857 = vpack.c.bf16 %v1661, %v1661
      %v1858 = vpack.c.bf16 %v1667, %v1667
      %v1859 = vpack.c.bf16 %v1673, %v1673
      %v1860 = vpack.c.bf16 %v1679, %v1679
      %v1861 = vpack.c.bf16 %v1685, %v1685
      %v1862 = vpack.c.bf16 %v1691, %v1691
      %v1863 = vpack.c.bf16 %v1697, %v1697
      %v1864 = vpack.c.bf16 %v1703, %v1703
      %v1865 = vpack.c.bf16 %v1709, %v1709
      %v1866 = vpack.c.bf16 %v1715, %v1715
      %v1867 = vpack.c.bf16 %v1721, %v1721
      %v1868 = vpack.c.bf16 %v1727, %v1727
      %v1869 = vpack.c.bf16 %v1733, %v1733
      %v1870 = vpack.c.bf16 %v1739, %v1739
      %v1871 = vpack.c.bf16 %v1745, %v1745
      %v1872 = vpack.c.bf16 %v1751, %v1751
      %v1873 = vpack.c.bf16 %v1757, %v1757
      %v1874 = vpack.c.bf16 %v1763, %v1763
      %v1875 = vpack.c.bf16 %v1769, %v1769
      %v1876 = vpack.c.bf16 %v1775, %v1775
      %v1877 = vpack.c.bf16 %v1781, %v1781
      %v1878 = vpack.c.bf16 %v1787, %v1787
      %v1879 = vpack.c.bf16 %v1793, %v1793
      %v1880 = vpack.c.bf16 %v1799, %v1799
      %v1881 = vpack.c.bf16 %v1805, %v1805
      %v1882 = vpack.c.bf16 %v1811, %v1811
      %v1883 = vpack.c.bf16 %v1817, %v1817
      %v1884 = vld [vmem:[%s5] sm:$0xf]
      %v1885 = vld [vmem:[%s5 + $0x4] sm:$0xf]
      %v1886 = vld [vmem:[%s5 + $0x8] sm:$0xf]
      %v1887 = vld [vmem:[%s5 + $0xc] sm:$0xf]
      %v1888 = vld [vmem:[%s5 + $0x10] sm:$0xf]
      %v1889 = vld [vmem:[%s5 + $0x14] sm:$0xf]
      %v1890 = vld [vmem:[%s5 + $0x18] sm:$0xf]
      %v1891 = vld [vmem:[%s5 + $0x1c] sm:$0xf]
      %v1892 = vld [vmem:[%s5 + $0x20] sm:$0xf]
      %v1893 = vld [vmem:[%s5 + $0x24] sm:$0xf]
      %v1894 = vld [vmem:[%s5 + $0x28] sm:$0xf]
      %v1895 = vld [vmem:[%s5 + $0x2c] sm:$0xf]
      %v1896 = vld [vmem:[%s5 + $0x30] sm:$0xf]
      %v1897 = vld [vmem:[%s5 + $0x34] sm:$0xf]
      %v1898 = vld [vmem:[%s5 + $0x38] sm:$0xf]
      %v1899 = vld [vmem:[%s5 + $0x3c] sm:$0xf]
      %v1901 = vlaneseq
      %v1902 = vshrl.u32 %v1901, 7
      %v1903 = vsub.s32 0, %v1902
      %v1904 = vrot.slane %v1819, %v1903
      %v1970 = vunpack.c.l.b16 %v1820
      %v1971 = vunpack.c.l.b16 %v1821
      %v1972 = vunpack.c.l.b16 %v1822
      %v1973 = vunpack.c.l.b16 %v1823
      %v1974 = vunpack.c.l.b16 %v1824
      %v1975 = vunpack.c.l.b16 %v1825
      %v1976 = vunpack.c.l.b16 %v1826
      %v1977 = vunpack.c.l.b16 %v1827
      %v1978 = vunpack.c.l.b16 %v1828
      %v1979 = vunpack.c.l.b16 %v1829
      %v1980 = vunpack.c.l.b16 %v1830
      %v1981 = vunpack.c.l.b16 %v1831
      %v1982 = vunpack.c.l.b16 %v1832
      %v1983 = vunpack.c.l.b16 %v1833
      %v1984 = vunpack.c.l.b16 %v1834
      %v1985 = vunpack.c.l.b16 %v1835
      %v1986 = vunpack.c.l.b16 %v1836
      %v1987 = vunpack.c.l.b16 %v1837
      %v1988 = vunpack.c.l.b16 %v1838
      %v1989 = vunpack.c.l.b16 %v1839
      %v1990 = vunpack.c.l.b16 %v1840
      %v1991 = vunpack.c.l.b16 %v1841
      %v1992 = vunpack.c.l.b16 %v1842
      %v1993 = vunpack.c.l.b16 %v1843
      %v1994 = vunpack.c.l.b16 %v1844
      %v1995 = vunpack.c.l.b16 %v1845
      %v1996 = vunpack.c.l.b16 %v1846
      %v1997 = vunpack.c.l.b16 %v1847
      %v1998 = vunpack.c.l.b16 %v1848
      %v1999 = vunpack.c.l.b16 %v1849
      %v2000 = vunpack.c.l.b16 %v1850
      %v2001 = vunpack.c.l.b16 %v1851
      %v2002 = vunpack.c.l.b16 %v1852
      %v2003 = vunpack.c.l.b16 %v1853
      %v2004 = vunpack.c.l.b16 %v1854
      %v2005 = vunpack.c.l.b16 %v1855
      %v2006 = vunpack.c.l.b16 %v1856
      %v2007 = vunpack.c.l.b16 %v1857
      %v2008 = vunpack.c.l.b16 %v1858
      %v2009 = vunpack.c.l.b16 %v1859
      %v2010 = vunpack.c.l.b16 %v1860
      %v2011 = vunpack.c.l.b16 %v1861
      %v2012 = vunpack.c.l.b16 %v1862
      %v2013 = vunpack.c.l.b16 %v1863
      %v2014 = vunpack.c.l.b16 %v1864
      %v2015 = vunpack.c.l.b16 %v1865
      %v2016 = vunpack.c.l.b16 %v1866
      %v2017 = vunpack.c.l.b16 %v1867
      %v2018 = vunpack.c.l.b16 %v1868
      %v2019 = vunpack.c.l.b16 %v1869
      %v2020 = vunpack.c.l.b16 %v1870
      %v2021 = vunpack.c.l.b16 %v1871
      %v2022 = vunpack.c.l.b16 %v1872
      %v2023 = vunpack.c.l.b16 %v1873
      %v2024 = vunpack.c.l.b16 %v1874
      %v2025 = vunpack.c.l.b16 %v1875
      %v2026 = vunpack.c.l.b16 %v1876
      %v2027 = vunpack.c.l.b16 %v1877
      %v2028 = vunpack.c.l.b16 %v1878
      %v2029 = vunpack.c.l.b16 %v1879
      %v2030 = vunpack.c.l.b16 %v1880
      %v2031 = vunpack.c.l.b16 %v1881
      %v2032 = vunpack.c.l.b16 %v1882
      %v2033 = vunpack.c.l.b16 %v1883
      %vm2034 = vcmask 1041409
      %v2035 = vsel %vm2034, %v1971, %v1970
      %vm2036 = vcmask 1042434
      %v2037 = vsel %vm2036, %v1972, %v2035
      %vm2038 = vcmask 1043459
      %v2039 = vsel %vm2038, %v1973, %v2037
      %vm2040 = vcmask 1044484
      %v2041 = vsel %vm2040, %v1974, %v2039
      %vm2042 = vcmask 1045509
      %v2043 = vsel %vm2042, %v1975, %v2041
      %vm2044 = vcmask 1046534
      %v2045 = vsel %vm2044, %v1976, %v2043
      %vm2046 = vcmask 1047559
      %v2047 = vsel %vm2046, %v1977, %v2045
      %v2048 = vsel %vm2034, %v1979, %v1978
      %v2049 = vsel %vm2036, %v1980, %v2048
      %v2050 = vsel %vm2038, %v1981, %v2049
      %v2051 = vsel %vm2040, %v1982, %v2050
      %v2052 = vsel %vm2042, %v1983, %v2051
      %v2053 = vsel %vm2044, %v1984, %v2052
      %v2054 = vsel %vm2046, %v1985, %v2053
      %v2055 = vsel %vm2034, %v1987, %v1986
      %v2056 = vsel %vm2036, %v1988, %v2055
      %v2057 = vsel %vm2038, %v1989, %v2056
      %v2058 = vsel %vm2040, %v1990, %v2057
      %v2059 = vsel %vm2042, %v1991, %v2058
      %v2060 = vsel %vm2044, %v1992, %v2059
      %v2061 = vsel %vm2046, %v1993, %v2060
      %v2062 = vsel %vm2034, %v1995, %v1994
      %v2063 = vsel %vm2036, %v1996, %v2062
      %v2064 = vsel %vm2038, %v1997, %v2063
      %v2065 = vsel %vm2040, %v1998, %v2064
      %v2066 = vsel %vm2042, %v1999, %v2065
      %v2067 = vsel %vm2044, %v2000, %v2066
      %v2068 = vsel %vm2046, %v2001, %v2067
      %v2069 = vsel %vm2034, %v2003, %v2002
      %v2070 = vsel %vm2036, %v2004, %v2069
      %v2071 = vsel %vm2038, %v2005, %v2070
      %v2072 = vsel %vm2040, %v2006, %v2071
      %v2073 = vsel %vm2042, %v2007, %v2072
      %v2074 = vsel %vm2044, %v2008, %v2073
      %v2075 = vsel %vm2046, %v2009, %v2074
      %v2076 = vsel %vm2034, %v2011, %v2010
      %v2077 = vsel %vm2036, %v2012, %v2076
      %v2078 = vsel %vm2038, %v2013, %v2077
      %v2079 = vsel %vm2040, %v2014, %v2078
      %v2080 = vsel %vm2042, %v2015, %v2079
      %v2081 = vsel %vm2044, %v2016, %v2080
      %v2082 = vsel %vm2046, %v2017, %v2081
      %v2083 = vsel %vm2034, %v2019, %v2018
      %v2084 = vsel %vm2036, %v2020, %v2083
      %v2085 = vsel %vm2038, %v2021, %v2084
      %v2086 = vsel %vm2040, %v2022, %v2085
      %v2087 = vsel %vm2042, %v2023, %v2086
      %v2088 = vsel %vm2044, %v2024, %v2087
      %v2089 = vsel %vm2046, %v2025, %v2088
      %v2090 = vsel %vm2034, %v2027, %v2026
      %v2091 = vsel %vm2036, %v2028, %v2090
      %v2092 = vsel %vm2038, %v2029, %v2091
      %v2093 = vsel %vm2040, %v2030, %v2092
      %v2094 = vsel %vm2042, %v2031, %v2093
      %v2095 = vsel %vm2044, %v2032, %v2094
      %v2096 = vsel %vm2046, %v2033, %v2095
      %v2097 = vpack.c.b16 %v2054, %v2047
      %v2098 = vpack.c.b16 %v2068, %v2061
      %v2099 = vpack.c.b16 %v2082, %v2075
      %v2100 = vpack.c.b16 %v2096, %v2089
      %v2121 = vunpack.c.l.b16 %v1884
      %v2122 = vunpack.c.l.b16 %v1885
      %v2123 = vunpack.c.l.b16 %v1886
      %v2124 = vunpack.c.l.b16 %v1887
      %v2125 = vunpack.c.l.b16 %v1888
      %v2126 = vunpack.c.l.b16 %v1889
      %v2127 = vunpack.c.l.b16 %v1890
      %v2128 = vunpack.c.l.b16 %v1891
      %v2129 = vunpack.c.l.b16 %v1892
      %v2130 = vunpack.c.l.b16 %v1893
      %v2131 = vunpack.c.l.b16 %v1894
      %v2132 = vunpack.c.l.b16 %v1895
      %v2133 = vunpack.c.l.b16 %v1896
      %v2134 = vunpack.c.l.b16 %v1897
      %v2135 = vunpack.c.l.b16 %v1898
      %v2136 = vunpack.c.l.b16 %v1899
      %v2137 = vpack.c.b16 %v2122, %v2121
      %v2138 = vpack.c.b16 %v2124, %v2123
      %v2139 = vpack.c.b16 %v2126, %v2125
      %v2140 = vpack.c.b16 %v2128, %v2127
      %v2141 = vpack.c.b16 %v2130, %v2129
      %v2142 = vpack.c.b16 %v2132, %v2131
      %v2143 = vpack.c.b16 %v2134, %v2133
      %v2144 = vpack.c.b16 %v2136, %v2135
      %2153 = vmatprep.subr.bf16.mxu0 0
      %2154 = vmatpush1.bf16.msra.mxu0 %v2137
      %2155 = vmatprep.subr.bf16.mxu0 0
      %2156 = vmatpush1.bf16.msra.mxu0 %v2138
      %2157 = vmatprep.subr.bf16.mxu0 0
      %2158 = vmatpush1.bf16.msra.mxu0 %v2139
      %2159 = vmatprep.subr.bf16.mxu0 0
      %2160 = vmatpush1.bf16.msra.mxu0 %v2140
      %2161 = vmatprep.subr.bf16.mxu0 0
      %2162 = vmatpush1.bf16.msra.mxu0 %v2141
      %2163 = vmatprep.subr.bf16.mxu0 0
      %2164 = vmatpush1.bf16.msra.mxu0 %v2142
      %2165 = vmatprep.subr.bf16.mxu0 0
      %2166 = vmatpush1.bf16.msra.mxu0 %v2143
      %2167 = vmatprep.subr.bf16.mxu0 0
      %2168 = vmatpush1.bf16.msra.mxu0 %v2144
      %2169 = vmatprep.subr.bf16.mxu0 0
      %2170 = vmatpush1.bf16.msra.mxu0 0
      %2171 = vmatprep.subr.bf16.mxu0 0
      %2172 = vmatpush1.bf16.msra.mxu0 0
      %2173 = vmatprep.subr.bf16.mxu0 0
      %2174 = vmatpush1.bf16.msra.mxu0 0
      %2175 = vmatprep.subr.bf16.mxu0 0
      %2176 = vmatpush1.bf16.msra.mxu0 0
      %2177 = vmatprep.subr.bf16.mxu0 0
      %2178 = vmatpush1.bf16.msra.mxu0 0
      %2179 = vmatprep.subr.bf16.mxu0 0
      %2180 = vmatpush1.bf16.msra.mxu0 0
      %2181 = vmatprep.subr.bf16.mxu0 0
      %2182 = vmatpush1.bf16.msra.mxu0 0
      %2183 = vmatprep.subr.bf16.mxu0 0
      %2184 = vmatpush1.bf16.msra.mxu0 0
      %2185 = vmatprep.mubr.bf16.mxu0 0
      %2186 = vmatmul.mubr.bf16.gmra.mrb[0].mxu0 %v2097
      %v2187 = vpop.f32.mrb[0].mxu0
      %v2188 = vadd.f32 %v1904, %v2187
      %v2189 = vpop.f32.mrb[0].mxu0
      %v2190 = vpop.f32.mrb[0].mxu0
      %v2191 = vadd.f32 %v1904, %v2190
      %v2192 = vpop.f32.mrb[0].mxu0
      %2193 = vmatprep.mubr.bf16.mxu0 0
      %2194 = vmatmul.mubr.bf16.gmra.mrb[0].mxu0 %v2098
      %v2195 = vpop.f32.mrb[0].mxu0
      %v2196 = vadd.f32 %v1904, %v2195
      %v2197 = vpop.f32.mrb[0].mxu0
      %v2198 = vpop.f32.mrb[0].mxu0
      %v2199 = vadd.f32 %v1904, %v2198
      %v2200 = vpop.f32.mrb[0].mxu0
      %2201 = vmatprep.mubr.bf16.mxu0 0
      %2202 = vmatmul.mubr.bf16.gmra.mrb[0].mxu0 %v2099
      %v2203 = vpop.f32.mrb[0].mxu0
      %v2204 = vadd.f32 %v1904, %v2203
      %v2205 = vpop.f32.mrb[0].mxu0
      %v2206 = vpop.f32.mrb[0].mxu0
      %v2207 = vadd.f32 %v1904, %v2206
      %v2208 = vpop.f32.mrb[0].mxu0
      %2209 = vmatprep.mubr.bf16.mxu0 0
      %2210 = vmatmul.mubr.bf16.gmra.mrb[0].mxu0 %v2100
      %v2211 = vpop.f32.mrb[0].mxu0
      %v2212 = vadd.f32 %v1904, %v2211
      %v2213 = vpop.f32.mrb[0].mxu0
      %v2214 = vpop.f32.mrb[0].mxu0
      %v2215 = vadd.f32 %v1904, %v2214
      %v2216 = vpop.f32.mrb[0].mxu0
      %2217 = vdwg.mxu0
      %v2218 = vpack.c.bf16 %v2191, %v2188
      %v2219 = vpack.c.bf16 %v2199, %v2196
      %v2220 = vpack.c.bf16 %v2207, %v2204
      %v2221 = vpack.c.bf16 %v2215, %v2212
      %v2226 = vunpack.c.l.b16 %v2218
      %v2227 = vunpack.c.h.b16 %v2218
      %v2228 = vunpack.c.l.b16 %v2219
      %v2229 = vunpack.c.h.b16 %v2219
      %v2230 = vunpack.c.l.b16 %v2220
      %v2231 = vunpack.c.h.b16 %v2220
      %v2232 = vunpack.c.l.b16 %v2221
      %v2233 = vunpack.c.h.b16 %v2221
      %v2234 = vpack.c.b16 %v2226, %v2226
      %v2235 = vpack.c.b16 %v2227, %v2227
      %v2236 = vpack.c.b16 %v2228, %v2228
      %v2237 = vpack.c.b16 %v2229, %v2229
      %v2238 = vpack.c.b16 %v2230, %v2230
      %v2239 = vpack.c.b16 %v2231, %v2231
      %v2240 = vpack.c.b16 %v2232, %v2232
      %v2241 = vpack.c.b16 %v2233, %v2233
      %2250 = vst [vmem:[%s280] sm:$0xf] %v2234
      %2251 = vst [vmem:[%s280 + $0x4] sm:$0xf] %v2235
      %2252 = vst [vmem:[%s280 + $0x8] sm:$0xf] %v2236
      %2253 = vst [vmem:[%s280 + $0xc] sm:$0xf] %v2237
      %2254 = vst [vmem:[%s280 + $0x10] sm:$0xf] %v2238
      %2255 = vst [vmem:[%s280 + $0x14] sm:$0xf] %v2239
      %2256 = vst [vmem:[%s280 + $0x18] sm:$0xf] %v2240
      %2257 = vst [vmem:[%s280 + $0x1c] sm:$0xf] %v2241
      %s2258 = smul.u32 8, %s18
      %p2259 = scmp.lt.s32.totalorder %s2258, 15
      %s2260 = scalar_select %p2259, %s2258, 15
      %s2261 = smul.addr %s2260, 4
      %s2262 = scalar_lea.vmem %s7, %s2261
      // Predicated region
      $region49: #{a_call__.1} parent=47 // pred_check
        %p2263 = pneg %p188
      $region50: #{a_call__.1} parent=47 // pred_check_branch
        %2265 = sbr.rel (%p2263) target = $region52
      $region51: #{a_call__.1} parent=47 // pred_region
        %s2266 = smul.u32 8, %s18
      $region52: #{a_call__.1} parent=47 // pred_fallthru
        _
    $region48: #{a_call__.1} parent=5 // pred_fallthru
      _
    %p2267 = scmp.le.s32.totalorder 2, %s13
    // Predicated region
    $region53: #{a_call__.1} parent=5 // pred_check
      %p2268 = pneg %p2267
    $region54: #{a_call__.1} parent=5 // pred_check_branch
      %2270 = sbr.rel (%p2268) target = $region56
    $region55: #{a_call__.1} parent=5 // pred_region
      %s2271 = ssub.s32 %s13, 2
      // Predicated region
      $region57: #{a_call__.1} parent=55 // pred_check
        %p2272 = pneg %p194
      $region58: #{a_call__.1} parent=55 // pred_check_branch
        %2274 = sbr.rel (%p2272) target = $region60
      $region59: #{a_call__.1} parent=55 // pred_region
        %s2275 = smul.u32 8, %s19
        %p2276 = scmp.lt.s32.totalorder %s2275, 15
        %s2277 = scalar_select %p2276, %s2275, 15
        %s2278 = smul.addr %s2277, 4
        %s2279 = scalar_lea.vmem %s7, %s2278
      $region60: #{a_call__.1} parent=55 // pred_fallthru
        _
    $region56: #{a_call__.1} parent=5 // pred_fallthru
      _
  $region6: #{a_call__.1} parent=0 // loop_footer
    %s17 = sadd.s32 1, %s13
  $region7: #{a_call__.1} parent=0 // loop_footer_branch
    %12 = sbr.rel target = $region3
  $region8: #{a_call__.1} parent=0 // loop_exit
    _

</llo_original>
